<compile_context>
chip_gen: v7x
topology: tpu7x:2x2x1
jax: 0.10.0
libtpu: 0.0.40
codegen_flags: <defaults>
</compile_context>

<pallas_src>
import jax
import jax.numpy as jnp
import numpy as np
from jax import lax
from jax.experimental import pallas as pl
from jax.experimental.pallas import tpu as pltpu


def stm_kernel(idx_ref, emb_ref, w_ref, b_ref, bpsbd_ref, m_ref, bias_ref, o_ref):
    B = o_ref.shape[0]
    V = emb_ref.shape[0]
    two_b = idx_ref.shape[0]

    # Fused embedding lookup: one-hot(indices) @ emb_table on the MXU.
    # (vocab is tiny and resident in VMEM; exact, no precision loss)
    lane_ids = lax.broadcasted_iota(jnp.int32, (two_b, V), 1)
    onehot = (lane_ids == idx_ref[...]).astype(jnp.float32)          # (2B, V)
    x = jnp.dot(onehot, emb_ref[...],
                preferred_element_type=jnp.float32)                   # (2B, E)

    # One fused projection + tanh for both inputs: (2B, E) @ (E, K*H).
    h = jnp.tanh(
        jnp.dot(x, w_ref[...], preferred_element_type=jnp.float32)
        + b_ref[...])
    h1 = h[:B, :]      # (B, K*H)  -- slice k lives in columns k*H:(k+1)*H
    h2 = h[B:, :]      # (B, K*H)

    # All K bilinear projections in one MXU matmul via the block-diagonal
    # weight stack: b1[:, kH:(k+1)H] = h1_k @ bps_W[k].
    b1 = jnp.dot(h1, bpsbd_ref[...], preferred_element_type=jnp.float32)

    # Per-slice reduce + co_W combine folded into a single (K*H, 1) matmul
    # (keeps the reduction on the MXU instead of the XLU); bps_b and co_b are
    # folded into one precomputed scalar bias living in SMEM.
    o_ref[...] = (jnp.dot(b1 * h2, m_ref[...],
                          preferred_element_type=jnp.float32)
                  + bias_ref[0])


def stm_forward(x1_idx, x2_idx, emb_table, st_w, st_b, bps_w, bps_b, co_w, co_b):
    """x1_idx, x2_idx: int32 [B] token indices."""
    B = x1_idx.shape[0]
    V, E = emb_table.shape
    K, _, H = st_w.shape
    KH = K * H

    # Stack both index vectors; the gather itself happens inside the kernel.
    idx = jnp.concatenate([x1_idx, x2_idx], axis=0).astype(jnp.int32)
    idx = idx.reshape(2 * B, 1)

    # Layout plumbing (wrapper-side, tiny): fuse the K slices.
    w_all = jnp.transpose(st_w, (1, 0, 2)).reshape(E, KH)          # (E, K*H)
    b_all = st_b.reshape(1, KH)                                    # (1, K*H)
    bps_bd = jax.scipy.linalg.block_diag(*bps_w)                   # (K*H, K*H)
    m_vec = jnp.repeat(co_w.reshape(K), H).reshape(KH, 1)          # (K*H, 1)
    bias = (jnp.sum(co_w.reshape(K) * bps_b.reshape(K))
            + co_b[0, 0]).reshape(1).astype(jnp.float32)           # SMEM scalar

    vmem = pltpu.MemorySpace.VMEM
    smem = pltpu.MemorySpace.SMEM
    return pl.pallas_call(
        stm_kernel,
        out_shape=jax.ShapeDtypeStruct((B, 1), jnp.float32),
        in_specs=[
            pl.BlockSpec(memory_space=vmem),   # idx        (2B, 1) int32
            pl.BlockSpec(memory_space=vmem),   # emb_table  (V, E)
            pl.BlockSpec(memory_space=vmem),   # w_all      (E, K*H)
            pl.BlockSpec(memory_space=vmem),   # b_all      (1, K*H)
            pl.BlockSpec(memory_space=vmem),   # bps_bd     (K*H, K*H)
            pl.BlockSpec(memory_space=vmem),   # m_vec      (K*H, 1)
            pl.BlockSpec(memory_space=smem),   # fused bias (1,)
        ],
        out_specs=pl.BlockSpec(memory_space=vmem),
    )(idx, emb_table, w_all, b_all, bps_bd, m_vec, bias)


def stm_reference(x1_idx, x2_idx, emb_table, st_w, st_b, bps_w, bps_b, co_w, co_b):
    x1 = emb_table[x1_idx]
    x2 = emb_table[x2_idx]
    K = st_w.shape[0]
    bs = []
    for k in range(K):
        h1 = jnp.tanh(x1 @ st_w[k] + st_b[k, 0])
        h2 = jnp.tanh(x2 @ st_w[k] + st_b[k, 0])
        b1 = h1 @ bps_w[k]
        s = jnp.sum(b1 * h2, axis=-1) + bps_b[k, 0, 0]
        bs.append(s)
    bs = jnp.stack(bs, axis=1)                       # (B, K)
    return bs @ co_w[:, 0, 0][:, None] + co_b[0, 0]  # (B, 1)


def xavier_normal(key, shape_out_in):
    fan_out, fan_in = shape_out_in
    std = float(np.sqrt(2.0 / (fan_in + fan_out)))
    return std * jax.random.normal(key, (fan_out, fan_in), dtype=jnp.float32)


if __name__ == "__main__":
    # Keep reference matmuls in full f32 so both sides use the same precision.
    jax.config.update("jax_default_matmul_precision", "highest")

    # Small shapes consistent with the module's forward.
    B, VOCAB, E, H, K = 8, 16, 128, 32, 4

    key = jax.random.PRNGKey(0)
    keys = jax.random.split(key, 3 + 2 * K)

    # Embedding table (map_emb); weights_init does not touch it.
    emb_table = jax.random.normal(keys[0], (VOCAB, E), dtype=jnp.float32)

    # st_W: K x Linear(E, H, bias=True) -> xavier_normal weight, bias = 0.1
    st_w = jnp.stack([xavier_normal(keys[1 + k], (H, E)).T for k in range(K)])       # (K, E, H)
    st_b = jnp.full((K, 1, H), 0.1, dtype=jnp.float32)

    # bps_W: K x Linear(H, H, bias=False) -> xavier_normal weight
    bps_w = jnp.stack([xavier_normal(keys[1 + K + k], (H, H)).T for k in range(K)])  # (K, H, H)
    # bps_b: K scalars initialized to 0.1
    bps_b = jnp.full((K, 1, 1), 0.1, dtype=jnp.float32)

    # co_W: Linear(K, 1, bias=True) -> xavier_normal weight [1, K], bias = 0.1
    co_w = xavier_normal(keys[1 + 2 * K], (1, K)).reshape(K, 1, 1)                   # (K, 1, 1)
    co_b = jnp.full((1, 1), 0.1, dtype=jnp.float32)

    # Integer token indices.
    x1_idx = jax.random.randint(keys[2 + 2 * K], (B,), 0, VOCAB, dtype=jnp.int32)
    x2_idx = jax.random.randint(jax.random.fold_in(key, 99), (B,), 0, VOCAB,
                                dtype=jnp.int32)

    out = stm_forward(x1_idx, x2_idx, emb_table, st_w, st_b, bps_w, bps_b, co_w, co_b)
    out = jax.block_until_ready(out)

    ref = stm_reference(x1_idx, x2_idx, emb_table, st_w, st_b, bps_w, bps_b, co_w, co_b)
    np.testing.assert_allclose(np.asarray(out), np.asarray(ref), rtol=2e-5, atol=2e-5)

    print("KERNEL_OK")
</pallas_src>

<mosaic_0001>
module attributes {stable_mosaic.version = 11 : i64} {
  func.func @stm_kernel(%arg0: memref<16x1xi32, #tpu.memory_space<vmem>>, %arg1: memref<16x128xf32, #tpu.memory_space<vmem>>, %arg2: memref<128x128xf32, #tpu.memory_space<vmem>>, %arg3: memref<1x128xf32, #tpu.memory_space<vmem>>, %arg4: memref<128x128xf32, #tpu.memory_space<vmem>>, %arg5: memref<128x1xf32, #tpu.memory_space<vmem>>, %arg6: memref<1xf32, #tpu.memory_space<smem>>, %arg7: memref<8x1xf32, #tpu.memory_space<vmem>>) attributes {dimension_semantics = [], scalar_prefetch = 0 : i64, scratch_operands = 0 : i64, tpu.core_type = #tpu.core_type<tc>} {
    %0 = tpu.iota {dimensions = array<i32: 1>} : vector<16x16xi32>
    %c0 = arith.constant 0 : index
    %c0_0 = arith.constant 0 : index
    %1 = vector.load %arg0[%c0, %c0_0] : memref<16x1xi32, #tpu.memory_space<vmem>>, vector<16x1xi32>
    %2 = vector.broadcast %1 : vector<16x1xi32> to vector<16x16xi32>
    %3 = arith.cmpi eq, %0, %2 : vector<16x16xi32>
    %4 = arith.extui %3 : vector<16x16xi1> to vector<16x16xi32>
    %5 = arith.sitofp %4 : vector<16x16xi32> to vector<16x16xf32>
    %c0_1 = arith.constant 0 : index
    %c0_2 = arith.constant 0 : index
    %6 = vector.load %arg1[%c0_1, %c0_2] : memref<16x128xf32, #tpu.memory_space<vmem>>, vector<16x128xf32>
    %cst = arith.constant dense<0.000000e+00> : vector<16x128xf32>
    %7 = tpu.matmul %5, %6, %cst {dimension_numbers = #tpu.dot_dimension_numbers<[1], [0], [0], [1], [0, 0, 1, 1], [], []>, precision = #tpu.contract_precision<fp32>} : vector<16x16xf32>, vector<16x128xf32>, vector<16x128xf32> -> vector<16x128xf32>
    %c0_3 = arith.constant 0 : index
    %c0_4 = arith.constant 0 : index
    %8 = vector.load %arg2[%c0_3, %c0_4] : memref<128x128xf32, #tpu.memory_space<vmem>>, vector<128x128xf32>
    %cst_5 = arith.constant dense<0.000000e+00> : vector<16x128xf32>
    %9 = tpu.matmul %7, %8, %cst_5 {dimension_numbers = #tpu.dot_dimension_numbers<[1], [0], [0], [1], [0, 0, 1, 1], [], []>, precision = #tpu.contract_precision<fp32>} : vector<16x128xf32>, vector<128x128xf32>, vector<16x128xf32> -> vector<16x128xf32>
    %c0_6 = arith.constant 0 : index
    %c0_7 = arith.constant 0 : index
    %10 = vector.load %arg3[%c0_6, %c0_7] : memref<1x128xf32, #tpu.memory_space<vmem>>, vector<1x128xf32>
    %11 = vector.broadcast %10 : vector<1x128xf32> to vector<16x128xf32>
    %12 = arith.addf %9, %11 : vector<16x128xf32>
    %13 = math.tanh %12 : vector<16x128xf32>
    %14 = vector.extract_strided_slice %13 {offsets = [0, 0], sizes = [8, 128], strides = [1, 1]} : vector<16x128xf32> to vector<8x128xf32>
    %15 = vector.extract_strided_slice %13 {offsets = [8, 0], sizes = [8, 128], strides = [1, 1]} : vector<16x128xf32> to vector<8x128xf32>
    %c0_8 = arith.constant 0 : index
    %c0_9 = arith.constant 0 : index
    %16 = vector.load %arg4[%c0_8, %c0_9] : memref<128x128xf32, #tpu.memory_space<vmem>>, vector<128x128xf32>
    %cst_10 = arith.constant dense<0.000000e+00> : vector<8x128xf32>
    %17 = tpu.matmul %14, %16, %cst_10 {dimension_numbers = #tpu.dot_dimension_numbers<[1], [0], [0], [1], [0, 0, 1, 1], [], []>, precision = #tpu.contract_precision<fp32>} : vector<8x128xf32>, vector<128x128xf32>, vector<8x128xf32> -> vector<8x128xf32>
    %18 = arith.mulf %17, %15 : vector<8x128xf32>
    %c0_11 = arith.constant 0 : index
    %c0_12 = arith.constant 0 : index
    %19 = vector.load %arg5[%c0_11, %c0_12] : memref<128x1xf32, #tpu.memory_space<vmem>>, vector<128x1xf32>
    %cst_13 = arith.constant dense<0.000000e+00> : vector<8x1xf32>
    %20 = tpu.matmul %18, %19, %cst_13 {dimension_numbers = #tpu.dot_dimension_numbers<[1], [0], [0], [1], [0, 0, 1, 1], [], []>, precision = #tpu.contract_precision<fp32>} : vector<8x128xf32>, vector<128x1xf32>, vector<8x1xf32> -> vector<8x1xf32>
    %c0_14 = arith.constant 0 : index
    %21 = memref.load %arg6[%c0_14] : memref<1xf32, #tpu.memory_space<smem>>
    %22 = vector.broadcast %21 : f32 to vector<8x1xf32>
    %23 = arith.addf %20, %22 : vector<8x1xf32>
    %c0_15 = arith.constant 0 : index
    %c0_16 = arith.constant 0 : index
    %24 = vector.load %arg7[%c0_15, %c0_16] : memref<8x1xf32, #tpu.memory_space<vmem>>, vector<8x1xf32>
    tpu.vector_store %arg7[%c0_15, %c0_16], %23 {strides = array<i32>} : memref<8x1xf32, #tpu.memory_space<vmem>>, vector<8x1xf32>,
    return
  }
}

</mosaic_0001>

<llo_original>
// kernel: tpu_custom_call.1
$region0: #{tpu_custom_call.1}
  #allocation0 [shape = 'u32[]', space=smem, size = 0x4, offset = 0x4, fixed_abs, tag = 'smem constant byte address 0x4 - core index']
  #allocation1 [shape = 'u32[144,128]{1,0:T(1,128)}', space=vmem, size = 0x12000, scoped, tag = 'internal scratch']
  #allocation2 [shape = 'f32[1]{0:T(128)S(6)}', space=smem, size = 0x200, scoped, tag = 'scoped memory for tpu_custom_call.1']
  %s0 = inlined_call_operand.vmem [shape: s32[16,1], index: 0, kind: input, shape index: {}]
  %s1 = inlined_call_operand.vmem [shape: f32[16,128], index: 1, kind: input, shape index: {}]
  %s2 = inlined_call_operand.vmem [shape: f32[128,128], index: 2, kind: input, shape index: {}]
  %s3 = inlined_call_operand.vmem [shape: f32[1,128], index: 3, kind: input, shape index: {}]
  %s4 = inlined_call_operand.hbm [shape: f32[128,128], index: 4, kind: input, shape index: {}]
  %s5 = inlined_call_operand.vmem [shape: f32[128,1], index: 5, kind: input, shape index: {}]
  %s6 = inlined_call_operand.<no memory space> [shape: f32[1], index: 6, kind: input, shape index: {}]
  %s7 = inlined_call_operand.vmem [shape: f32[8,1], index: 7, kind: output, shape index: {}]
  %s8 = sld [smem:[#allocation0]]
  $region42: #{tpu_custom_call.1} parent=0
    _
  %s10 = ssub.s32 1, %s8
  %s11 = scalar_select 0, %s10, %s8
  %12 = sst [smem:[#allocation2]] %s6
  $region1: #{tpu_custom_call.1} parent=0
    #allocation3 [shape = 'u8[65536]{0}', space=vmem, size = 0x10000, scoped, tag = 'input window, operand 4, single buffered']
    #allocation4 [shape = 's32[1]{0}', space=sflag, size = 0x4, scoped, tag = 'scoped memory for tpu_custom_call.1']
    %13 = vsyncpa [#allocation4], 0
    // Predicated region
    $region2: #{tpu_custom_call.1} parent=1 // pred_check
      _
    $region3: #{tpu_custom_call.1} parent=1 // pred_check_branch
      %15 = sbr.rel (0) target = $region5
    $region4: #{tpu_custom_call.1} parent=1 // pred_region
      _
    $region5: #{tpu_custom_call.1} parent=1 // pred_fallthru
      _
    // Predicated region
    $region6: #{tpu_custom_call.1} parent=1 // pred_check
      _
    $region7: #{tpu_custom_call.1} parent=1 // pred_check_branch
      %17 = sbr.rel (0) target = $region9
    $region8: #{tpu_custom_call.1} parent=1 // pred_region
      _
    $region9: #{tpu_custom_call.1} parent=1 // pred_fallthru
      _
    // Predicated region
    $region10: #{tpu_custom_call.1} parent=1 // pred_check
      _
    $region11: #{tpu_custom_call.1} parent=1 // pred_check_branch
      %19 = sbr.rel (0) target = $region13
    $region12: #{tpu_custom_call.1} parent=1 // pred_region
      _
    $region13: #{tpu_custom_call.1} parent=1 // pred_fallthru
      _
    // Predicated region
    $region14: #{tpu_custom_call.1} parent=1 // pred_check
      _
    $region15: #{tpu_custom_call.1} parent=1 // pred_check_branch
      %21 = sbr.rel (0) target = $region17
    $region16: #{tpu_custom_call.1} parent=1 // pred_region
      _
    $region17: #{tpu_custom_call.1} parent=1 // pred_fallthru
      _
    // Predicated region
    $region18: #{tpu_custom_call.1} parent=1 // pred_check
      _
    $region19: #{tpu_custom_call.1} parent=1 // pred_check_branch
      %23 = sbr.rel (0) target = $region21
    $region20: #{tpu_custom_call.1} parent=1 // pred_region
      %s25 = ssub.s32 2048, 2048
      %26 = vsyncadd [#allocation4], %s25
      %s27 = sshll.u32 [#allocation3], 4
      %s28 = int_to_ptr.vmem [resolvable:$true] %s27
      %33 = dma.hbm_to_vmem [thread:$0]  %s4, 2048, %s28, [#allocation4], 128, 128, 8
    $region21: #{tpu_custom_call.1} parent=1 // pred_fallthru
      _
    // Predicated region
    $region22: #{tpu_custom_call.1} parent=1 // pred_check
      _
    $region23: #{tpu_custom_call.1} parent=1 // pred_check_branch
      %35 = sbr.rel (0) target = $region25
    $region24: #{tpu_custom_call.1} parent=1 // pred_region
      _
    $region25: #{tpu_custom_call.1} parent=1 // pred_fallthru
      _
    // Predicated region
    $region26: #{tpu_custom_call.1} parent=1 // pred_check
      _
    $region27: #{tpu_custom_call.1} parent=1 // pred_check_branch
      %37 = sbr.rel (0) target = $region29
    $region28: #{tpu_custom_call.1} parent=1 // pred_region
      _
    $region29: #{tpu_custom_call.1} parent=1 // pred_fallthru
      _
    // Predicated region
    $region30: #{tpu_custom_call.1} parent=1 // pred_check
      _
    $region31: #{tpu_custom_call.1} parent=1 // pred_check_branch
      %39 = sbr.rel (0) target = $region33
    $region32: #{tpu_custom_call.1} parent=1 // pred_region
      %40 = dma.done [#allocation4], 2048
    $region33: #{tpu_custom_call.1} parent=1 // pred_fallthru
      _
    %v41 = vlaneseq
    %v42 = vand.u32 %v41, 127
    %v43 = vld [vmem:[%s0] sm:$0xff]
    %v44 = vld [vmem:[%s0 + $0x8] sm:$0xff]
    %45 = vset.pattern.permute.xlu0 0
    %46 = vperm.xlu0 %45, %v43
    %v47 = vpop.permute.xlu0 %46
    %48 = vset.pattern.permute.xlu0 0
    %49 = vperm.xlu0 %48, %v44
    %v50 = vpop.permute.xlu0 %49
    %vm51 = vcmp.eq.s32.totalorder %v42, %v47
    %vm52 = vcmp.eq.s32.totalorder %v42, %v50
    %v53 = vsel %vm51, 1, 0
    %v54 = vsel %vm52, 1, 0
    %v55 = vcvt.s32.f32 %v53
    %v56 = vcvt.s32.f32 %v54
    %v57 = vld [vmem:[%s1] sm:$0xff]
    %v58 = vld [vmem:[%s1 + $0x8] sm:$0xff]
    %vm59 = vcmask 130048
    %v61 = vsel %vm59, %v55, 0
    %v64 = vsel %vm59, %v56, 0
    %66 = vmatprep.subr.mxu0 0.0
    %v67 = vand.u32 %v57, 4294901760
    %68 = vmatpush1.msra.mxu0 %v67
    %69 = vmatprep.subr.mxu0 0.0
    %v70 = vand.u32 %v58, 4294901760
    %71 = vmatpush1.msra.mxu0 %v70
    %72 = vmatprep.subr.mxu0 0.0
    %73 = vmatpush1.msra.mxu0 0.0
    %74 = vmatprep.subr.mxu0 0.0
    %75 = vmatpush1.msra.mxu0 0.0
    %76 = vmatprep.subr.mxu0 0.0
    %77 = vmatpush1.msra.mxu0 0.0
    %78 = vmatprep.subr.mxu0 0.0
    %79 = vmatpush1.msra.mxu0 0.0
    %80 = vmatprep.subr.mxu0 0.0
    %81 = vmatpush1.msra.mxu0 0.0
    %82 = vmatprep.subr.mxu0 0.0
    %83 = vmatpush1.msra.mxu0 0.0
    %84 = vmatprep.subr.mxu0 0.0
    %85 = vmatpush1.msra.mxu0 0.0
    %86 = vmatprep.subr.mxu0 0.0
    %87 = vmatpush1.msra.mxu0 0.0
    %88 = vmatprep.subr.mxu0 0.0
    %89 = vmatpush1.msra.mxu0 0.0
    %90 = vmatprep.subr.mxu0 0.0
    %91 = vmatpush1.msra.mxu0 0.0
    %92 = vmatprep.subr.mxu0 0.0
    %93 = vmatpush1.msra.mxu0 0.0
    %94 = vmatprep.subr.mxu0 0.0
    %95 = vmatpush1.msra.mxu0 0.0
    %96 = vmatprep.subr.mxu0 0.0
    %97 = vmatpush1.msra.mxu0 0.0
    %98 = vmatprep.subr.mxu0 0.0
    %99 = vmatpush1.msra.mxu0 0.0
    %100 = vmatprep.subr.mxu0 0.0
    %101 = vmatpush1.msra.mxu0 0.0
    %102 = vmatprep.subr.mxu0 0.0
    %103 = vmatpush1.msra.mxu0 0.0
    %104 = vmatprep.subr.mxu0 0.0
    %105 = vmatpush1.msra.mxu0 0.0
    %106 = vmatprep.subr.mxu0 0.0
    %107 = vmatpush1.msra.mxu0 0.0
    %108 = vmatprep.subr.mxu0 0.0
    %109 = vmatpush1.msra.mxu0 0.0
    %110 = vmatprep.subr.mxu0 0.0
    %111 = vmatpush1.msra.mxu0 0.0
    %112 = vmatprep.subr.mxu0 0.0
    %113 = vmatpush1.msra.mxu0 0.0
    %114 = vmatprep.subr.mxu0 0.0
    %115 = vmatpush1.msra.mxu0 0.0
    %116 = vmatprep.subr.mxu0 0.0
    %117 = vmatpush1.msra.mxu0 0.0
    %118 = vmatprep.subr.mxu0 0.0
    %119 = vmatpush1.msra.mxu0 0.0
    %120 = vmatprep.subr.mxu0 0.0
    %121 = vmatpush1.msra.mxu0 0.0
    %122 = vmatprep.subr.mxu0 0.0
    %123 = vmatpush1.msra.mxu0 0.0
    %124 = vmatprep.subr.mxu0 0.0
    %125 = vmatpush1.msra.mxu0 0.0
    %126 = vmatprep.subr.mxu0 0.0
    %127 = vmatpush1.msra.mxu0 0.0
    %128 = vmatprep.subr.mxu0 0.0
    %129 = vmatpush1.msra.mxu0 0.0
    %130 = vmatprep.subr.mxu0 0.0
    %131 = vmatpush1.msra.mxu0 0.0
    %132 = vmatprep.mubr.f32.mxu0 0.0
    %v133 = vand.u32 %v61, 4294901760
    %v134 = vsub.f32 %v61, %v133
    %v135 = vand.u32 %v134, 4294901760
    %v136 = vsub.f32 %v134, %v135
    %v137 = vand.u32 %v136, 4294901760
    %138 = vmatmul.mubr.f32.gmra.mrb[0].mxu0 %v137
    %v139 = vpop.f32.mrb[0].mxu0
    %v140 = vadd.f32 0.0, %v139
    %v141 = vpop.f32.mrb[0].mxu0
    %142 = vmatprep.mubr.f32.mxu0 0.0
    %v143 = vand.u32 %v64, 4294901760
    %v144 = vsub.f32 %v64, %v143
    %v145 = vand.u32 %v144, 4294901760
    %v146 = vsub.f32 %v144, %v145
    %v147 = vand.u32 %v146, 4294901760
    %148 = vmatmul.mubr.f32.gmra.mrb[0].mxu0 %v147
    %v149 = vpop.f32.mrb[0].mxu0
    %v150 = vadd.f32 0.0, %v149
    %v151 = vpop.f32.mrb[0].mxu0
    %152 = vdwg.mxu0
    %153 = vmatprep.subr.mxu0 0.0
    %v154 = vand.u32 %v57, 4294901760
    %v155 = vsub.f32 %v57, %v154
    %v156 = vand.u32 %v155, 4294901760
    %v157 = vsub.f32 %v155, %v156
    %v158 = vand.u32 %v157, 4294901760
    %159 = vmatpush1.msra.mxu0 %v158
    %160 = vmatprep.subr.mxu0 0.0
    %v161 = vand.u32 %v58, 4294901760
    %v162 = vsub.f32 %v58, %v161
    %v163 = vand.u32 %v162, 4294901760
    %v164 = vsub.f32 %v162, %v163
    %v165 = vand.u32 %v164, 4294901760
    %166 = vmatpush1.msra.mxu0 %v165
    %167 = vmatprep.subr.mxu0 0.0
    %168 = vmatpush1.msra.mxu0 0.0
    %169 = vmatprep.subr.mxu0 0.0
    %170 = vmatpush1.msra.mxu0 0.0
    %171 = vmatprep.subr.mxu0 0.0
    %172 = vmatpush1.msra.mxu0 0.0
    %173 = vmatprep.subr.mxu0 0.0
    %174 = vmatpush1.msra.mxu0 0.0
    %175 = vmatprep.subr.mxu0 0.0
    %176 = vmatpush1.msra.mxu0 0.0
    %177 = vmatprep.subr.mxu0 0.0
    %178 = vmatpush1.msra.mxu0 0.0
    %179 = vmatprep.subr.mxu0 0.0
    %180 = vmatpush1.msra.mxu0 0.0
    %181 = vmatprep.subr.mxu0 0.0
    %182 = vmatpush1.msra.mxu0 0.0
    %183 = vmatprep.subr.mxu0 0.0
    %184 = vmatpush1.msra.mxu0 0.0
    %185 = vmatprep.subr.mxu0 0.0
    %186 = vmatpush1.msra.mxu0 0.0
    %187 = vmatprep.subr.mxu0 0.0
    %188 = vmatpush1.msra.mxu0 0.0
    %189 = vmatprep.subr.mxu0 0.0
    %190 = vmatpush1.msra.mxu0 0.0
    %191 = vmatprep.subr.mxu0 0.0
    %192 = vmatpush1.msra.mxu0 0.0
    %193 = vmatprep.subr.mxu0 0.0
    %194 = vmatpush1.msra.mxu0 0.0
    %195 = vmatprep.subr.mxu0 0.0
    %196 = vmatpush1.msra.mxu0 0.0
    %197 = vmatprep.subr.mxu0 0.0
    %198 = vmatpush1.msra.mxu0 0.0
    %199 = vmatprep.subr.mxu0 0.0
    %200 = vmatpush1.msra.mxu0 0.0
    %201 = vmatprep.subr.mxu0 0.0
    %202 = vmatpush1.msra.mxu0 0.0
    %203 = vmatprep.subr.mxu0 0.0
    %204 = vmatpush1.msra.mxu0 0.0
    %205 = vmatprep.subr.mxu0 0.0
    %206 = vmatpush1.msra.mxu0 0.0
    %207 = vmatprep.subr.mxu0 0.0
    %208 = vmatpush1.msra.mxu0 0.0
    %209 = vmatprep.subr.mxu0 0.0
    %210 = vmatpush1.msra.mxu0 0.0
    %211 = vmatprep.subr.mxu0 0.0
    %212 = vmatpush1.msra.mxu0 0.0
    %213 = vmatprep.subr.mxu0 0.0
    %214 = vmatpush1.msra.mxu0 0.0
    %215 = vmatprep.subr.mxu0 0.0
    %216 = vmatpush1.msra.mxu0 0.0
    %217 = vmatprep.subr.mxu0 0.0
    %218 = vmatpush1.msra.mxu0 0.0
    %219 = vmatprep.subr.mxu0 0.0
    %220 = vmatpush1.msra.mxu0 0.0
    %221 = vmatprep.subr.mxu0 0.0
    %222 = vmatpush1.msra.mxu0 0.0
    %223 = vmatprep.subr.mxu0 0.0
    %224 = vmatpush1.msra.mxu0 0.0
    %225 = vmatprep.subr.mxu0 0.0
    %226 = vmatpush1.msra.mxu0 0.0
    %227 = vmatprep.mubr.f32.mxu0 0.0
    %v228 = vand.u32 %v61, 4294901760
    %229 = vmatmul.mubr.f32.gmra.mrb[0].mxu0 %v228
    %v230 = vpop.f32.mrb[0].mxu0
    %v231 = vadd.f32 %v140, %v230
    %v232 = vpop.f32.mrb[0].mxu0
    %233 = vmatprep.mubr.f32.mxu0 0.0
    %v234 = vand.u32 %v64, 4294901760
    %235 = vmatmul.mubr.f32.gmra.mrb[0].mxu0 %v234
    %v236 = vpop.f32.mrb[0].mxu0
    %v237 = vadd.f32 %v150, %v236
    %v238 = vpop.f32.mrb[0].mxu0
    %239 = vdwg.mxu0
    %240 = vmatprep.subr.mxu0 0.0
    %v241 = vand.u32 %v57, 4294901760
    %v242 = vsub.f32 %v57, %v241
    %243 = vmatpush1.msra.mxu0 %v242
    %244 = vmatprep.subr.mxu0 0.0
    %v245 = vand.u32 %v58, 4294901760
    %v246 = vsub.f32 %v58, %v245
    %247 = vmatpush1.msra.mxu0 %v246
    %248 = vmatprep.subr.mxu0 0.0
    %249 = vmatpush1.msra.mxu0 0.0
    %250 = vmatprep.subr.mxu0 0.0
    %251 = vmatpush1.msra.mxu0 0.0
    %252 = vmatprep.subr.mxu0 0.0
    %253 = vmatpush1.msra.mxu0 0.0
    %254 = vmatprep.subr.mxu0 0.0
    %255 = vmatpush1.msra.mxu0 0.0
    %256 = vmatprep.subr.mxu0 0.0
    %257 = vmatpush1.msra.mxu0 0.0
    %258 = vmatprep.subr.mxu0 0.0
    %259 = vmatpush1.msra.mxu0 0.0
    %260 = vmatprep.subr.mxu0 0.0
    %261 = vmatpush1.msra.mxu0 0.0
    %262 = vmatprep.subr.mxu0 0.0
    %263 = vmatpush1.msra.mxu0 0.0
    %264 = vmatprep.subr.mxu0 0.0
    %265 = vmatpush1.msra.mxu0 0.0
    %266 = vmatprep.subr.mxu0 0.0
    %267 = vmatpush1.msra.mxu0 0.0
    %268 = vmatprep.subr.mxu0 0.0
    %269 = vmatpush1.msra.mxu0 0.0
    %270 = vmatprep.subr.mxu0 0.0
    %271 = vmatpush1.msra.mxu0 0.0
    %272 = vmatprep.subr.mxu0 0.0
    %273 = vmatpush1.msra.mxu0 0.0
    %274 = vmatprep.subr.mxu0 0.0
    %275 = vmatpush1.msra.mxu0 0.0
    %276 = vmatprep.subr.mxu0 0.0
    %277 = vmatpush1.msra.mxu0 0.0
    %278 = vmatprep.subr.mxu0 0.0
    %279 = vmatpush1.msra.mxu0 0.0
    %280 = vmatprep.subr.mxu0 0.0
    %281 = vmatpush1.msra.mxu0 0.0
    %282 = vmatprep.subr.mxu0 0.0
    %283 = vmatpush1.msra.mxu0 0.0
    %284 = vmatprep.subr.mxu0 0.0
    %285 = vmatpush1.msra.mxu0 0.0
    %286 = vmatprep.subr.mxu0 0.0
    %287 = vmatpush1.msra.mxu0 0.0
    %288 = vmatprep.subr.mxu0 0.0
    %289 = vmatpush1.msra.mxu0 0.0
    %290 = vmatprep.subr.mxu0 0.0
    %291 = vmatpush1.msra.mxu0 0.0
    %292 = vmatprep.subr.mxu0 0.0
    %293 = vmatpush1.msra.mxu0 0.0
    %294 = vmatprep.subr.mxu0 0.0
    %295 = vmatpush1.msra.mxu0 0.0
    %296 = vmatprep.subr.mxu0 0.0
    %297 = vmatpush1.msra.mxu0 0.0
    %298 = vmatprep.subr.mxu0 0.0
    %299 = vmatpush1.msra.mxu0 0.0
    %300 = vmatprep.subr.mxu0 0.0
    %301 = vmatpush1.msra.mxu0 0.0
    %302 = vmatprep.subr.mxu0 0.0
    %303 = vmatpush1.msra.mxu0 0.0
    %304 = vmatprep.subr.mxu0 0.0
    %305 = vmatpush1.msra.mxu0 0.0
    %306 = vmatprep.subr.mxu0 0.0
    %307 = vmatpush1.msra.mxu0 0.0
    %308 = vmatprep.mubr.f32.mxu0 0.0
    %v309 = vand.u32 %v61, 4294901760
    %v310 = vsub.f32 %v61, %v309
    %311 = vmatmul.mubr.f32.gmra.mrb[0].mxu0 %v310
    %v312 = vpop.f32.mrb[0].mxu0
    %v313 = vadd.f32 %v231, %v312
    %v314 = vpop.f32.mrb[0].mxu0
    %315 = vmatprep.mubr.f32.mxu0 0.0
    %v316 = vand.u32 %v64, 4294901760
    %v317 = vsub.f32 %v64, %v316
    %318 = vmatmul.mubr.f32.gmra.mrb[0].mxu0 %v317
    %v319 = vpop.f32.mrb[0].mxu0
    %v320 = vadd.f32 %v237, %v319
    %v321 = vpop.f32.mrb[0].mxu0
    %322 = vdwg.mxu0
    %323 = vmatprep.subr.mxu0 0.0
    %v324 = vand.u32 %v57, 4294901760
    %325 = vmatpush1.msra.mxu0 %v324
    %326 = vmatprep.subr.mxu0 0.0
    %v327 = vand.u32 %v58, 4294901760
    %328 = vmatpush1.msra.mxu0 %v327
    %329 = vmatprep.subr.mxu0 0.0
    %330 = vmatpush1.msra.mxu0 0.0
    %331 = vmatprep.subr.mxu0 0.0
    %332 = vmatpush1.msra.mxu0 0.0
    %333 = vmatprep.subr.mxu0 0.0
    %334 = vmatpush1.msra.mxu0 0.0
    %335 = vmatprep.subr.mxu0 0.0
    %336 = vmatpush1.msra.mxu0 0.0
    %337 = vmatprep.subr.mxu0 0.0
    %338 = vmatpush1.msra.mxu0 0.0
    %339 = vmatprep.subr.mxu0 0.0
    %340 = vmatpush1.msra.mxu0 0.0
    %341 = vmatprep.subr.mxu0 0.0
    %342 = vmatpush1.msra.mxu0 0.0
    %343 = vmatprep.subr.mxu0 0.0
    %344 = vmatpush1.msra.mxu0 0.0
    %345 = vmatprep.subr.mxu0 0.0
    %346 = vmatpush1.msra.mxu0 0.0
    %347 = vmatprep.subr.mxu0 0.0
    %348 = vmatpush1.msra.mxu0 0.0
    %349 = vmatprep.subr.mxu0 0.0
    %350 = vmatpush1.msra.mxu0 0.0
    %351 = vmatprep.subr.mxu0 0.0
    %352 = vmatpush1.msra.mxu0 0.0
    %353 = vmatprep.subr.mxu0 0.0
    %354 = vmatpush1.msra.mxu0 0.0
    %355 = vmatprep.subr.mxu0 0.0
    %356 = vmatpush1.msra.mxu0 0.0
    %357 = vmatprep.subr.mxu0 0.0
    %358 = vmatpush1.msra.mxu0 0.0
    %359 = vmatprep.subr.mxu0 0.0
    %360 = vmatpush1.msra.mxu0 0.0
    %361 = vmatprep.subr.mxu0 0.0
    %362 = vmatpush1.msra.mxu0 0.0
    %363 = vmatprep.subr.mxu0 0.0
    %364 = vmatpush1.msra.mxu0 0.0
    %365 = vmatprep.subr.mxu0 0.0
    %366 = vmatpush1.msra.mxu0 0.0
    %367 = vmatprep.subr.mxu0 0.0
    %368 = vmatpush1.msra.mxu0 0.0
    %369 = vmatprep.subr.mxu0 0.0
    %370 = vmatpush1.msra.mxu0 0.0
    %371 = vmatprep.subr.mxu0 0.0
    %372 = vmatpush1.msra.mxu0 0.0
    %373 = vmatprep.subr.mxu0 0.0
    %374 = vmatpush1.msra.mxu0 0.0
    %375 = vmatprep.subr.mxu0 0.0
    %376 = vmatpush1.msra.mxu0 0.0
    %377 = vmatprep.subr.mxu0 0.0
    %378 = vmatpush1.msra.mxu0 0.0
    %379 = vmatprep.subr.mxu0 0.0
    %380 = vmatpush1.msra.mxu0 0.0
    %381 = vmatprep.subr.mxu0 0.0
    %382 = vmatpush1.msra.mxu0 0.0
    %383 = vmatprep.subr.mxu0 0.0
    %384 = vmatpush1.msra.mxu0 0.0
    %385 = vmatprep.subr.mxu0 0.0
    %386 = vmatpush1.msra.mxu0 0.0
    %387 = vmatprep.subr.mxu0 0.0
    %388 = vmatpush1.msra.mxu0 0.0
    %389 = vmatprep.mubr.f32.mxu0 0.0
    %v390 = vand.u32 %v61, 4294901760
    %v391 = vsub.f32 %v61, %v390
    %v392 = vand.u32 %v391, 4294901760
    %393 = vmatmul.mubr.f32.gmra.mrb[0].mxu0 %v392
    %v394 = vpop.f32.mrb[0].mxu0
    %v395 = vadd.f32 %v313, %v394
    %v396 = vpop.f32.mrb[0].mxu0
    %397 = vmatprep.mubr.f32.mxu0 0.0
    %v398 = vand.u32 %v64, 4294901760
    %v399 = vsub.f32 %v64, %v398
    %v400 = vand.u32 %v399, 4294901760
    %401 = vmatmul.mubr.f32.gmra.mrb[0].mxu0 %v400
    %v402 = vpop.f32.mrb[0].mxu0
    %v403 = vadd.f32 %v320, %v402
    %v404 = vpop.f32.mrb[0].mxu0
    %405 = vdwg.mxu0
    %406 = vmatprep.subr.mxu0 0.0
    %v407 = vand.u32 %v57, 4294901760
    %v408 = vsub.f32 %v57, %v407
    %v409 = vand.u32 %v408, 4294901760
    %410 = vmatpush1.msra.mxu0 %v409
    %411 = vmatprep.subr.mxu0 0.0
    %v412 = vand.u32 %v58, 4294901760
    %v413 = vsub.f32 %v58, %v412
    %v414 = vand.u32 %v413, 4294901760
    %415 = vmatpush1.msra.mxu0 %v414
    %416 = vmatprep.subr.mxu0 0.0
    %417 = vmatpush1.msra.mxu0 0.0
    %418 = vmatprep.subr.mxu0 0.0
    %419 = vmatpush1.msra.mxu0 0.0
    %420 = vmatprep.subr.mxu0 0.0
    %421 = vmatpush1.msra.mxu0 0.0
    %422 = vmatprep.subr.mxu0 0.0
    %423 = vmatpush1.msra.mxu0 0.0
    %424 = vmatprep.subr.mxu0 0.0
    %425 = vmatpush1.msra.mxu0 0.0
    %426 = vmatprep.subr.mxu0 0.0
    %427 = vmatpush1.msra.mxu0 0.0
    %428 = vmatprep.subr.mxu0 0.0
    %429 = vmatpush1.msra.mxu0 0.0
    %430 = vmatprep.subr.mxu0 0.0
    %431 = vmatpush1.msra.mxu0 0.0
    %432 = vmatprep.subr.mxu0 0.0
    %433 = vmatpush1.msra.mxu0 0.0
    %434 = vmatprep.subr.mxu0 0.0
    %435 = vmatpush1.msra.mxu0 0.0
    %436 = vmatprep.subr.mxu0 0.0
    %437 = vmatpush1.msra.mxu0 0.0
    %438 = vmatprep.subr.mxu0 0.0
    %439 = vmatpush1.msra.mxu0 0.0
    %440 = vmatprep.subr.mxu0 0.0
    %441 = vmatpush1.msra.mxu0 0.0
    %442 = vmatprep.subr.mxu0 0.0
    %443 = vmatpush1.msra.mxu0 0.0
    %444 = vmatprep.subr.mxu0 0.0
    %445 = vmatpush1.msra.mxu0 0.0
    %446 = vmatprep.subr.mxu0 0.0
    %447 = vmatpush1.msra.mxu0 0.0
    %448 = vmatprep.subr.mxu0 0.0
    %449 = vmatpush1.msra.mxu0 0.0
    %450 = vmatprep.subr.mxu0 0.0
    %451 = vmatpush1.msra.mxu0 0.0
    %452 = vmatprep.subr.mxu0 0.0
    %453 = vmatpush1.msra.mxu0 0.0
    %454 = vmatprep.subr.mxu0 0.0
    %455 = vmatpush1.msra.mxu0 0.0
    %456 = vmatprep.subr.mxu0 0.0
    %457 = vmatpush1.msra.mxu0 0.0
    %458 = vmatprep.subr.mxu0 0.0
    %459 = vmatpush1.msra.mxu0 0.0
    %460 = vmatprep.subr.mxu0 0.0
    %461 = vmatpush1.msra.mxu0 0.0
    %462 = vmatprep.subr.mxu0 0.0
    %463 = vmatpush1.msra.mxu0 0.0
    %464 = vmatprep.subr.mxu0 0.0
    %465 = vmatpush1.msra.mxu0 0.0
    %466 = vmatprep.subr.mxu0 0.0
    %467 = vmatpush1.msra.mxu0 0.0
    %468 = vmatprep.subr.mxu0 0.0
    %469 = vmatpush1.msra.mxu0 0.0
    %470 = vmatprep.subr.mxu0 0.0
    %471 = vmatpush1.msra.mxu0 0.0
    %472 = vmatprep.subr.mxu0 0.0
    %473 = vmatpush1.msra.mxu0 0.0
    %474 = vmatprep.subr.mxu0 0.0
    %475 = vmatpush1.msra.mxu0 0.0
    %476 = vmatprep.mubr.f32.mxu0 0.0
    %v477 = vand.u32 %v61, 4294901760
    %478 = vmatmul.mubr.f32.gmra.mrb[0].mxu0 %v477
    %v479 = vpop.f32.mrb[0].mxu0
    %v480 = vadd.f32 %v395, %v479
    %v481 = vpop.f32.mrb[0].mxu0
    %482 = vmatprep.mubr.f32.mxu0 0.0
    %v483 = vand.u32 %v64, 4294901760
    %484 = vmatmul.mubr.f32.gmra.mrb[0].mxu0 %v483
    %v485 = vpop.f32.mrb[0].mxu0
    %v486 = vadd.f32 %v403, %v485
    %v487 = vpop.f32.mrb[0].mxu0
    %488 = vdwg.mxu0
    %489 = vmatprep.subr.mxu0 0.0
    %v490 = vand.u32 %v57, 4294901760
    %491 = vmatpush1.msra.mxu0 %v490
    %492 = vmatprep.subr.mxu0 0.0
    %v493 = vand.u32 %v58, 4294901760
    %494 = vmatpush1.msra.mxu0 %v493
    %495 = vmatprep.subr.mxu0 0.0
    %496 = vmatpush1.msra.mxu0 0.0
    %497 = vmatprep.subr.mxu0 0.0
    %498 = vmatpush1.msra.mxu0 0.0
    %499 = vmatprep.subr.mxu0 0.0
    %500 = vmatpush1.msra.mxu0 0.0
    %501 = vmatprep.subr.mxu0 0.0
    %502 = vmatpush1.msra.mxu0 0.0
    %503 = vmatprep.subr.mxu0 0.0
    %504 = vmatpush1.msra.mxu0 0.0
    %505 = vmatprep.subr.mxu0 0.0
    %506 = vmatpush1.msra.mxu0 0.0
    %507 = vmatprep.subr.mxu0 0.0
    %508 = vmatpush1.msra.mxu0 0.0
    %509 = vmatprep.subr.mxu0 0.0
    %510 = vmatpush1.msra.mxu0 0.0
    %511 = vmatprep.subr.mxu0 0.0
    %512 = vmatpush1.msra.mxu0 0.0
    %513 = vmatprep.subr.mxu0 0.0
    %514 = vmatpush1.msra.mxu0 0.0
    %515 = vmatprep.subr.mxu0 0.0
    %516 = vmatpush1.msra.mxu0 0.0
    %517 = vmatprep.subr.mxu0 0.0
    %518 = vmatpush1.msra.mxu0 0.0
    %519 = vmatprep.subr.mxu0 0.0
    %520 = vmatpush1.msra.mxu0 0.0
    %521 = vmatprep.subr.mxu0 0.0
    %522 = vmatpush1.msra.mxu0 0.0
    %523 = vmatprep.subr.mxu0 0.0
    %524 = vmatpush1.msra.mxu0 0.0
    %525 = vmatprep.subr.mxu0 0.0
    %526 = vmatpush1.msra.mxu0 0.0
    %527 = vmatprep.subr.mxu0 0.0
    %528 = vmatpush1.msra.mxu0 0.0
    %529 = vmatprep.subr.mxu0 0.0
    %530 = vmatpush1.msra.mxu0 0.0
    %531 = vmatprep.subr.mxu0 0.0
    %532 = vmatpush1.msra.mxu0 0.0
    %533 = vmatprep.subr.mxu0 0.0
    %534 = vmatpush1.msra.mxu0 0.0
    %535 = vmatprep.subr.mxu0 0.0
    %536 = vmatpush1.msra.mxu0 0.0
    %537 = vmatprep.subr.mxu0 0.0
    %538 = vmatpush1.msra.mxu0 0.0
    %539 = vmatprep.subr.mxu0 0.0
    %540 = vmatpush1.msra.mxu0 0.0
    %541 = vmatprep.subr.mxu0 0.0
    %542 = vmatpush1.msra.mxu0 0.0
    %543 = vmatprep.subr.mxu0 0.0
    %544 = vmatpush1.msra.mxu0 0.0
    %545 = vmatprep.subr.mxu0 0.0
    %546 = vmatpush1.msra.mxu0 0.0
    %547 = vmatprep.subr.mxu0 0.0
    %548 = vmatpush1.msra.mxu0 0.0
    %549 = vmatprep.subr.mxu0 0.0
    %550 = vmatpush1.msra.mxu0 0.0
    %551 = vmatprep.subr.mxu0 0.0
    %552 = vmatpush1.msra.mxu0 0.0
    %553 = vmatprep.subr.mxu0 0.0
    %554 = vmatpush1.msra.mxu0 0.0
    %555 = vmatprep.mubr.f32.mxu0 0.0
    %v556 = vand.u32 %v61, 4294901760
    %557 = vmatmul.mubr.f32.gmra.mrb[0].mxu0 %v556
    %v558 = vpop.f32.mrb[0].mxu0
    %v559 = vadd.f32 %v480, %v558
    %v560 = vpop.f32.mrb[0].mxu0
    %561 = vmatprep.mubr.f32.mxu0 0.0
    %v562 = vand.u32 %v64, 4294901760
    %563 = vmatmul.mubr.f32.gmra.mrb[0].mxu0 %v562
    %v564 = vpop.f32.mrb[0].mxu0
    %v565 = vadd.f32 %v486, %v564
    %v566 = vpop.f32.mrb[0].mxu0
    %567 = vdwg.mxu0
    %v568 = vld [vmem:[%s2] sm:$0xff]
    %v569 = vld [vmem:[%s2 + $0x8] sm:$0xff]
    %v570 = vld [vmem:[%s2 + $0x10] sm:$0xff]
    %v571 = vld [vmem:[%s2 + $0x18] sm:$0xff]
    %v572 = vld [vmem:[%s2 + $0x20] sm:$0xff]
    %v573 = vld [vmem:[%s2 + $0x28] sm:$0xff]
    %v574 = vld [vmem:[%s2 + $0x30] sm:$0xff]
    %v575 = vld [vmem:[%s2 + $0x38] sm:$0xff]
    %v576 = vld [vmem:[%s2 + $0x40] sm:$0xff]
    %v577 = vld [vmem:[%s2 + $0x48] sm:$0xff]
    %v578 = vld [vmem:[%s2 + $0x50] sm:$0xff]
    %v579 = vld [vmem:[%s2 + $0x58] sm:$0xff]
    %v580 = vld [vmem:[%s2 + $0x60] sm:$0xff]
    %v581 = vld [vmem:[%s2 + $0x68] sm:$0xff]
    %v582 = vld [vmem:[%s2 + $0x70] sm:$0xff]
    %v583 = vld [vmem:[%s2 + $0x78] sm:$0xff]
    %v584 = vld [vmem:[%s3] sm:$0x1]
    %v586 = vlaneseq
    %v587 = vshrl.u32 %v586, 7
    %v588 = vsub.s32 0, %v587
    %v589 = vrot.slane %v584, %v588
    %591 = vmatprep.subr.mxu0 0.0
    %v592 = vand.u32 %v568, 4294901760
    %593 = vmatpush1.msra.mxu0 %v592
    %594 = vmatprep.subr.mxu0 0.0
    %v595 = vand.u32 %v569, 4294901760
    %596 = vmatpush1.msra.mxu0 %v595
    %597 = vmatprep.subr.mxu0 0.0
    %v598 = vand.u32 %v570, 4294901760
    %599 = vmatpush1.msra.mxu0 %v598
    %600 = vmatprep.subr.mxu0 0.0
    %v601 = vand.u32 %v571, 4294901760
    %602 = vmatpush1.msra.mxu0 %v601
    %603 = vmatprep.subr.mxu0 0.0
    %v604 = vand.u32 %v572, 4294901760
    %605 = vmatpush1.msra.mxu0 %v604
    %606 = vmatprep.subr.mxu0 0.0
    %v607 = vand.u32 %v573, 4294901760
    %608 = vmatpush1.msra.mxu0 %v607
    %609 = vmatprep.subr.mxu0 0.0
    %v610 = vand.u32 %v574, 4294901760
    %611 = vmatpush1.msra.mxu0 %v610
    %612 = vmatprep.subr.mxu0 0.0
    %v613 = vand.u32 %v575, 4294901760
    %614 = vmatpush1.msra.mxu0 %v613
    %615 = vmatprep.subr.mxu0 0.0
    %v616 = vand.u32 %v576, 4294901760
    %617 = vmatpush1.msra.mxu0 %v616
    %618 = vmatprep.subr.mxu0 0.0
    %v619 = vand.u32 %v577, 4294901760
    %620 = vmatpush1.msra.mxu0 %v619
    %621 = vmatprep.subr.mxu0 0.0
    %v622 = vand.u32 %v578, 4294901760
    %623 = vmatpush1.msra.mxu0 %v622
    %624 = vmatprep.subr.mxu0 0.0
    %v625 = vand.u32 %v579, 4294901760
    %626 = vmatpush1.msra.mxu0 %v625
    %627 = vmatprep.subr.mxu0 0.0
    %v628 = vand.u32 %v580, 4294901760
    %629 = vmatpush1.msra.mxu0 %v628
    %630 = vmatprep.subr.mxu0 0.0
    %v631 = vand.u32 %v581, 4294901760
    %632 = vmatpush1.msra.mxu0 %v631
    %633 = vmatprep.subr.mxu0 0.0
    %v634 = vand.u32 %v582, 4294901760
    %635 = vmatpush1.msra.mxu0 %v634
    %636 = vmatprep.subr.mxu0 0.0
    %v637 = vand.u32 %v583, 4294901760
    %638 = vmatpush1.msra.mxu0 %v637
    %639 = vmatprep.subr.mxu0 0.0
    %640 = vmatpush1.msra.mxu0 0.0
    %641 = vmatprep.subr.mxu0 0.0
    %642 = vmatpush1.msra.mxu0 0.0
    %643 = vmatprep.subr.mxu0 0.0
    %644 = vmatpush1.msra.mxu0 0.0
    %645 = vmatprep.subr.mxu0 0.0
    %646 = vmatpush1.msra.mxu0 0.0
    %647 = vmatprep.subr.mxu0 0.0
    %648 = vmatpush1.msra.mxu0 0.0
    %649 = vmatprep.subr.mxu0 0.0
    %650 = vmatpush1.msra.mxu0 0.0
    %651 = vmatprep.subr.mxu0 0.0
    %652 = vmatpush1.msra.mxu0 0.0
    %653 = vmatprep.subr.mxu0 0.0
    %654 = vmatpush1.msra.mxu0 0.0
    %655 = vmatprep.subr.mxu0 0.0
    %656 = vmatpush1.msra.mxu0 0.0
    %657 = vmatprep.subr.mxu0 0.0
    %658 = vmatpush1.msra.mxu0 0.0
    %659 = vmatprep.subr.mxu0 0.0
    %660 = vmatpush1.msra.mxu0 0.0
    %661 = vmatprep.subr.mxu0 0.0
    %662 = vmatpush1.msra.mxu0 0.0
    %663 = vmatprep.subr.mxu0 0.0
    %664 = vmatpush1.msra.mxu0 0.0
    %665 = vmatprep.subr.mxu0 0.0
    %666 = vmatpush1.msra.mxu0 0.0
    %667 = vmatprep.subr.mxu0 0.0
    %668 = vmatpush1.msra.mxu0 0.0
    %669 = vmatprep.subr.mxu0 0.0
    %670 = vmatpush1.msra.mxu0 0.0
    %671 = vmatprep.mubr.f32.mxu0 0.0
    %v672 = vand.u32 %v559, 4294901760
    %v673 = vsub.f32 %v559, %v672
    %v674 = vand.u32 %v673, 4294901760
    %v675 = vsub.f32 %v673, %v674
    %v676 = vand.u32 %v675, 4294901760
    %677 = vmatmul.mubr.f32.gmra.mrb[0].mxu0 %v676
    %v678 = vpop.f32.mrb[0].mxu0
    %v679 = vadd.f32 %v589, %v678
    %v680 = vpop.f32.mrb[0].mxu0
    %681 = vmatprep.mubr.f32.mxu0 0.0
    %v682 = vand.u32 %v565, 4294901760
    %v683 = vsub.f32 %v565, %v682
    %v684 = vand.u32 %v683, 4294901760
    %v685 = vsub.f32 %v683, %v684
    %v686 = vand.u32 %v685, 4294901760
    %687 = vmatmul.mubr.f32.gmra.mrb[0].mxu0 %v686
    %v688 = vpop.f32.mrb[0].mxu0
    %v689 = vadd.f32 %v589, %v688
    %v690 = vpop.f32.mrb[0].mxu0
    %691 = vdwg.mxu0
    %692 = vmatprep.subr.mxu0 0.0
    %v693 = vand.u32 %v568, 4294901760
    %v694 = vsub.f32 %v568, %v693
    %v695 = vand.u32 %v694, 4294901760
    %v696 = vsub.f32 %v694, %v695
    %v697 = vand.u32 %v696, 4294901760
    %698 = vmatpush1.msra.mxu0 %v697
    %699 = vmatprep.subr.mxu0 0.0
    %v700 = vand.u32 %v569, 4294901760
    %v701 = vsub.f32 %v569, %v700
    %v702 = vand.u32 %v701, 4294901760
    %v703 = vsub.f32 %v701, %v702
    %v704 = vand.u32 %v703, 4294901760
    %705 = vmatpush1.msra.mxu0 %v704
    %706 = vmatprep.subr.mxu0 0.0
    %v707 = vand.u32 %v570, 4294901760
    %v708 = vsub.f32 %v570, %v707
    %v709 = vand.u32 %v708, 4294901760
    %v710 = vsub.f32 %v708, %v709
    %v711 = vand.u32 %v710, 4294901760
    %712 = vmatpush1.msra.mxu0 %v711
    %713 = vmatprep.subr.mxu0 0.0
    %v714 = vand.u32 %v571, 4294901760
    %v715 = vsub.f32 %v571, %v714
    %v716 = vand.u32 %v715, 4294901760
    %v717 = vsub.f32 %v715, %v716
    %v718 = vand.u32 %v717, 4294901760
    %719 = vmatpush1.msra.mxu0 %v718
    %720 = vmatprep.subr.mxu0 0.0
    %v721 = vand.u32 %v572, 4294901760
    %v722 = vsub.f32 %v572, %v721
    %v723 = vand.u32 %v722, 4294901760
    %v724 = vsub.f32 %v722, %v723
    %v725 = vand.u32 %v724, 4294901760
    %726 = vmatpush1.msra.mxu0 %v725
    %727 = vmatprep.subr.mxu0 0.0
    %v728 = vand.u32 %v573, 4294901760
    %v729 = vsub.f32 %v573, %v728
    %v730 = vand.u32 %v729, 4294901760
    %v731 = vsub.f32 %v729, %v730
    %v732 = vand.u32 %v731, 4294901760
    %733 = vmatpush1.msra.mxu0 %v732
    %734 = vmatprep.subr.mxu0 0.0
    %v735 = vand.u32 %v574, 4294901760
    %v736 = vsub.f32 %v574, %v735
    %v737 = vand.u32 %v736, 4294901760
    %v738 = vsub.f32 %v736, %v737
    %v739 = vand.u32 %v738, 4294901760
    %740 = vmatpush1.msra.mxu0 %v739
    %741 = vmatprep.subr.mxu0 0.0
    %v742 = vand.u32 %v575, 4294901760
    %v743 = vsub.f32 %v575, %v742
    %v744 = vand.u32 %v743, 4294901760
    %v745 = vsub.f32 %v743, %v744
    %v746 = vand.u32 %v745, 4294901760
    %747 = vmatpush1.msra.mxu0 %v746
    %748 = vmatprep.subr.mxu0 0.0
    %v749 = vand.u32 %v576, 4294901760
    %v750 = vsub.f32 %v576, %v749
    %v751 = vand.u32 %v750, 4294901760
    %v752 = vsub.f32 %v750, %v751
    %v753 = vand.u32 %v752, 4294901760
    %754 = vmatpush1.msra.mxu0 %v753
    %755 = vmatprep.subr.mxu0 0.0
    %v756 = vand.u32 %v577, 4294901760
    %v757 = vsub.f32 %v577, %v756
    %v758 = vand.u32 %v757, 4294901760
    %v759 = vsub.f32 %v757, %v758
    %v760 = vand.u32 %v759, 4294901760
    %761 = vmatpush1.msra.mxu0 %v760
    %762 = vmatprep.subr.mxu0 0.0
    %v763 = vand.u32 %v578, 4294901760
    %v764 = vsub.f32 %v578, %v763
    %v765 = vand.u32 %v764, 4294901760
    %v766 = vsub.f32 %v764, %v765
    %v767 = vand.u32 %v766, 4294901760
    %768 = vmatpush1.msra.mxu0 %v767
    %769 = vmatprep.subr.mxu0 0.0
    %v770 = vand.u32 %v579, 4294901760
    %v771 = vsub.f32 %v579, %v770
    %v772 = vand.u32 %v771, 4294901760
    %v773 = vsub.f32 %v771, %v772
    %v774 = vand.u32 %v773, 4294901760
    %775 = vmatpush1.msra.mxu0 %v774
    %776 = vmatprep.subr.mxu0 0.0
    %v777 = vand.u32 %v580, 4294901760
    %v778 = vsub.f32 %v580, %v777
    %v779 = vand.u32 %v778, 4294901760
    %v780 = vsub.f32 %v778, %v779
    %v781 = vand.u32 %v780, 4294901760
    %782 = vmatpush1.msra.mxu0 %v781
    %783 = vmatprep.subr.mxu0 0.0
    %v784 = vand.u32 %v581, 4294901760
    %v785 = vsub.f32 %v581, %v784
    %v786 = vand.u32 %v785, 4294901760
    %v787 = vsub.f32 %v785, %v786
    %v788 = vand.u32 %v787, 4294901760
    %789 = vmatpush1.msra.mxu0 %v788
    %790 = vmatprep.subr.mxu0 0.0
    %v791 = vand.u32 %v582, 4294901760
    %v792 = vsub.f32 %v582, %v791
    %v793 = vand.u32 %v792, 4294901760
    %v794 = vsub.f32 %v792, %v793
    %v795 = vand.u32 %v794, 4294901760
    %796 = vmatpush1.msra.mxu0 %v795
    %797 = vmatprep.subr.mxu0 0.0
    %v798 = vand.u32 %v583, 4294901760
    %v799 = vsub.f32 %v583, %v798
    %v800 = vand.u32 %v799, 4294901760
    %v801 = vsub.f32 %v799, %v800
    %v802 = vand.u32 %v801, 4294901760
    %803 = vmatpush1.msra.mxu0 %v802
    %804 = vmatprep.subr.mxu0 0.0
    %805 = vmatpush1.msra.mxu0 0.0
    %806 = vmatprep.subr.mxu0 0.0
    %807 = vmatpush1.msra.mxu0 0.0
    %808 = vmatprep.subr.mxu0 0.0
    %809 = vmatpush1.msra.mxu0 0.0
    %810 = vmatprep.subr.mxu0 0.0
    %811 = vmatpush1.msra.mxu0 0.0
    %812 = vmatprep.subr.mxu0 0.0
    %813 = vmatpush1.msra.mxu0 0.0
    %814 = vmatprep.subr.mxu0 0.0
    %815 = vmatpush1.msra.mxu0 0.0
    %816 = vmatprep.subr.mxu0 0.0
    %817 = vmatpush1.msra.mxu0 0.0
    %818 = vmatprep.subr.mxu0 0.0
    %819 = vmatpush1.msra.mxu0 0.0
    %820 = vmatprep.subr.mxu0 0.0
    %821 = vmatpush1.msra.mxu0 0.0
    %822 = vmatprep.subr.mxu0 0.0
    %823 = vmatpush1.msra.mxu0 0.0
    %824 = vmatprep.subr.mxu0 0.0
    %825 = vmatpush1.msra.mxu0 0.0
    %826 = vmatprep.subr.mxu0 0.0
    %827 = vmatpush1.msra.mxu0 0.0
    %828 = vmatprep.subr.mxu0 0.0
    %829 = vmatpush1.msra.mxu0 0.0
    %830 = vmatprep.subr.mxu0 0.0
    %831 = vmatpush1.msra.mxu0 0.0
    %832 = vmatprep.subr.mxu0 0.0
    %833 = vmatpush1.msra.mxu0 0.0
    %834 = vmatprep.subr.mxu0 0.0
    %835 = vmatpush1.msra.mxu0 0.0
    %836 = vmatprep.mubr.f32.mxu0 0.0
    %v837 = vand.u32 %v559, 4294901760
    %838 = vmatmul.mubr.f32.gmra.mrb[0].mxu0 %v837
    %v839 = vpop.f32.mrb[0].mxu0
    %v840 = vadd.f32 %v679, %v839
    %v841 = vpop.f32.mrb[0].mxu0
    %842 = vmatprep.mubr.f32.mxu0 0.0
    %v843 = vand.u32 %v565, 4294901760
    %844 = vmatmul.mubr.f32.gmra.mrb[0].mxu0 %v843
    %v845 = vpop.f32.mrb[0].mxu0
    %v846 = vadd.f32 %v689, %v845
    %v847 = vpop.f32.mrb[0].mxu0
    %848 = vdwg.mxu0
    %849 = vmatprep.subr.mxu0 0.0
    %v850 = vand.u32 %v568, 4294901760
    %v851 = vsub.f32 %v568, %v850
    %852 = vmatpush1.msra.mxu0 %v851
    %853 = vmatprep.subr.mxu0 0.0
    %v854 = vand.u32 %v569, 4294901760
    %v855 = vsub.f32 %v569, %v854
    %856 = vmatpush1.msra.mxu0 %v855
    %857 = vmatprep.subr.mxu0 0.0
    %v858 = vand.u32 %v570, 4294901760
    %v859 = vsub.f32 %v570, %v858
    %860 = vmatpush1.msra.mxu0 %v859
    %861 = vmatprep.subr.mxu0 0.0
    %v862 = vand.u32 %v571, 4294901760
    %v863 = vsub.f32 %v571, %v862
    %864 = vmatpush1.msra.mxu0 %v863
    %865 = vmatprep.subr.mxu0 0.0
    %v866 = vand.u32 %v572, 4294901760
    %v867 = vsub.f32 %v572, %v866
    %868 = vmatpush1.msra.mxu0 %v867
    %869 = vmatprep.subr.mxu0 0.0
    %v870 = vand.u32 %v573, 4294901760
    %v871 = vsub.f32 %v573, %v870
    %872 = vmatpush1.msra.mxu0 %v871
    %873 = vmatprep.subr.mxu0 0.0
    %v874 = vand.u32 %v574, 4294901760
    %v875 = vsub.f32 %v574, %v874
    %876 = vmatpush1.msra.mxu0 %v875
    %877 = vmatprep.subr.mxu0 0.0
    %v878 = vand.u32 %v575, 4294901760
    %v879 = vsub.f32 %v575, %v878
    %880 = vmatpush1.msra.mxu0 %v879
    %881 = vmatprep.subr.mxu0 0.0
    %v882 = vand.u32 %v576, 4294901760
    %v883 = vsub.f32 %v576, %v882
    %884 = vmatpush1.msra.mxu0 %v883
    %885 = vmatprep.subr.mxu0 0.0
    %v886 = vand.u32 %v577, 4294901760
    %v887 = vsub.f32 %v577, %v886
    %888 = vmatpush1.msra.mxu0 %v887
    %889 = vmatprep.subr.mxu0 0.0
    %v890 = vand.u32 %v578, 4294901760
    %v891 = vsub.f32 %v578, %v890
    %892 = vmatpush1.msra.mxu0 %v891
    %893 = vmatprep.subr.mxu0 0.0
    %v894 = vand.u32 %v579, 4294901760
    %v895 = vsub.f32 %v579, %v894
    %896 = vmatpush1.msra.mxu0 %v895
    %897 = vmatprep.subr.mxu0 0.0
    %v898 = vand.u32 %v580, 4294901760
    %v899 = vsub.f32 %v580, %v898
    %900 = vmatpush1.msra.mxu0 %v899
    %901 = vmatprep.subr.mxu0 0.0
    %v902 = vand.u32 %v581, 4294901760
    %v903 = vsub.f32 %v581, %v902
    %904 = vmatpush1.msra.mxu0 %v903
    %905 = vmatprep.subr.mxu0 0.0
    %v906 = vand.u32 %v582, 4294901760
    %v907 = vsub.f32 %v582, %v906
    %908 = vmatpush1.msra.mxu0 %v907
    %909 = vmatprep.subr.mxu0 0.0
    %v910 = vand.u32 %v583, 4294901760
    %v911 = vsub.f32 %v583, %v910
    %912 = vmatpush1.msra.mxu0 %v911
    %913 = vmatprep.subr.mxu0 0.0
    %914 = vmatpush1.msra.mxu0 0.0
    %915 = vmatprep.subr.mxu0 0.0
    %916 = vmatpush1.msra.mxu0 0.0
    %917 = vmatprep.subr.mxu0 0.0
    %918 = vmatpush1.msra.mxu0 0.0
    %919 = vmatprep.subr.mxu0 0.0
    %920 = vmatpush1.msra.mxu0 0.0
    %921 = vmatprep.subr.mxu0 0.0
    %922 = vmatpush1.msra.mxu0 0.0
    %923 = vmatprep.subr.mxu0 0.0
    %924 = vmatpush1.msra.mxu0 0.0
    %925 = vmatprep.subr.mxu0 0.0
    %926 = vmatpush1.msra.mxu0 0.0
    %927 = vmatprep.subr.mxu0 0.0
    %928 = vmatpush1.msra.mxu0 0.0
    %929 = vmatprep.subr.mxu0 0.0
    %930 = vmatpush1.msra.mxu0 0.0
    %931 = vmatprep.subr.mxu0 0.0
    %932 = vmatpush1.msra.mxu0 0.0
    %933 = vmatprep.subr.mxu0 0.0
    %934 = vmatpush1.msra.mxu0 0.0
    %935 = vmatprep.subr.mxu0 0.0
    %936 = vmatpush1.msra.mxu0 0.0
    %937 = vmatprep.subr.mxu0 0.0
    %938 = vmatpush1.msra.mxu0 0.0
    %939 = vmatprep.subr.mxu0 0.0
    %940 = vmatpush1.msra.mxu0 0.0
    %941 = vmatprep.subr.mxu0 0.0
    %942 = vmatpush1.msra.mxu0 0.0
    %943 = vmatprep.subr.mxu0 0.0
    %944 = vmatpush1.msra.mxu0 0.0
    %945 = vmatprep.mubr.f32.mxu0 0.0
    %v946 = vand.u32 %v559, 4294901760
    %v947 = vsub.f32 %v559, %v946
    %948 = vmatmul.mubr.f32.gmra.mrb[0].mxu0 %v947
    %v949 = vpop.f32.mrb[0].mxu0
    %v950 = vadd.f32 %v840, %v949
    %v951 = vpop.f32.mrb[0].mxu0
    %952 = vmatprep.mubr.f32.mxu0 0.0
    %v953 = vand.u32 %v565, 4294901760
    %v954 = vsub.f32 %v565, %v953
    %955 = vmatmul.mubr.f32.gmra.mrb[0].mxu0 %v954
    %v956 = vpop.f32.mrb[0].mxu0
    %v957 = vadd.f32 %v846, %v956
    %v958 = vpop.f32.mrb[0].mxu0
    %959 = vdwg.mxu0
    %960 = vmatprep.subr.mxu0 0.0
    %v961 = vand.u32 %v568, 4294901760
    %962 = vmatpush1.msra.mxu0 %v961
    %963 = vmatprep.subr.mxu0 0.0
    %v964 = vand.u32 %v569, 4294901760
    %965 = vmatpush1.msra.mxu0 %v964
    %966 = vmatprep.subr.mxu0 0.0
    %v967 = vand.u32 %v570, 4294901760
    %968 = vmatpush1.msra.mxu0 %v967
    %969 = vmatprep.subr.mxu0 0.0
    %v970 = vand.u32 %v571, 4294901760
    %971 = vmatpush1.msra.mxu0 %v970
    %972 = vmatprep.subr.mxu0 0.0
    %v973 = vand.u32 %v572, 4294901760
    %974 = vmatpush1.msra.mxu0 %v973
    %975 = vmatprep.subr.mxu0 0.0
    %v976 = vand.u32 %v573, 4294901760
    %977 = vmatpush1.msra.mxu0 %v976
    %978 = vmatprep.subr.mxu0 0.0
    %v979 = vand.u32 %v574, 4294901760
    %980 = vmatpush1.msra.mxu0 %v979
    %981 = vmatprep.subr.mxu0 0.0
    %v982 = vand.u32 %v575, 4294901760
    %983 = vmatpush1.msra.mxu0 %v982
    %984 = vmatprep.subr.mxu0 0.0
    %v985 = vand.u32 %v576, 4294901760
    %986 = vmatpush1.msra.mxu0 %v985
    %987 = vmatprep.subr.mxu0 0.0
    %v988 = vand.u32 %v577, 4294901760
    %989 = vmatpush1.msra.mxu0 %v988
    %990 = vmatprep.subr.mxu0 0.0
    %v991 = vand.u32 %v578, 4294901760
    %992 = vmatpush1.msra.mxu0 %v991
    %993 = vmatprep.subr.mxu0 0.0
    %v994 = vand.u32 %v579, 4294901760
    %995 = vmatpush1.msra.mxu0 %v994
    %996 = vmatprep.subr.mxu0 0.0
    %v997 = vand.u32 %v580, 4294901760
    %998 = vmatpush1.msra.mxu0 %v997
    %999 = vmatprep.subr.mxu0 0.0
    %v1000 = vand.u32 %v581, 4294901760
    %1001 = vmatpush1.msra.mxu0 %v1000
    %1002 = vmatprep.subr.mxu0 0.0
    %v1003 = vand.u32 %v582, 4294901760
    %1004 = vmatpush1.msra.mxu0 %v1003
    %1005 = vmatprep.subr.mxu0 0.0
    %v1006 = vand.u32 %v583, 4294901760
    %1007 = vmatpush1.msra.mxu0 %v1006
    %1008 = vmatprep.subr.mxu0 0.0
    %1009 = vmatpush1.msra.mxu0 0.0
    %1010 = vmatprep.subr.mxu0 0.0
    %1011 = vmatpush1.msra.mxu0 0.0
    %1012 = vmatprep.subr.mxu0 0.0
    %1013 = vmatpush1.msra.mxu0 0.0
    %1014 = vmatprep.subr.mxu0 0.0
    %1015 = vmatpush1.msra.mxu0 0.0
    %1016 = vmatprep.subr.mxu0 0.0
    %1017 = vmatpush1.msra.mxu0 0.0
    %1018 = vmatprep.subr.mxu0 0.0
    %1019 = vmatpush1.msra.mxu0 0.0
    %1020 = vmatprep.subr.mxu0 0.0
    %1021 = vmatpush1.msra.mxu0 0.0
    %1022 = vmatprep.subr.mxu0 0.0
    %1023 = vmatpush1.msra.mxu0 0.0
    %1024 = vmatprep.subr.mxu0 0.0
    %1025 = vmatpush1.msra.mxu0 0.0
    %1026 = vmatprep.subr.mxu0 0.0
    %1027 = vmatpush1.msra.mxu0 0.0
    %1028 = vmatprep.subr.mxu0 0.0
    %1029 = vmatpush1.msra.mxu0 0.0
    %1030 = vmatprep.subr.mxu0 0.0
    %1031 = vmatpush1.msra.mxu0 0.0
    %1032 = vmatprep.subr.mxu0 0.0
    %1033 = vmatpush1.msra.mxu0 0.0
    %1034 = vmatprep.subr.mxu0 0.0
    %1035 = vmatpush1.msra.mxu0 0.0
    %1036 = vmatprep.subr.mxu0 0.0
    %1037 = vmatpush1.msra.mxu0 0.0
    %1038 = vmatprep.subr.mxu0 0.0
    %1039 = vmatpush1.msra.mxu0 0.0
    %1040 = vmatprep.mubr.f32.mxu0 0.0
    %v1041 = vand.u32 %v559, 4294901760
    %v1042 = vsub.f32 %v559, %v1041
    %v1043 = vand.u32 %v1042, 4294901760
    %1044 = vmatmul.mubr.f32.gmra.mrb[0].mxu0 %v1043
    %v1045 = vpop.f32.mrb[0].mxu0
    %v1046 = vadd.f32 %v950, %v1045
    %v1047 = vpop.f32.mrb[0].mxu0
    %1048 = vmatprep.mubr.f32.mxu0 0.0
    %v1049 = vand.u32 %v565, 4294901760
    %v1050 = vsub.f32 %v565, %v1049
    %v1051 = vand.u32 %v1050, 4294901760
    %1052 = vmatmul.mubr.f32.gmra.mrb[0].mxu0 %v1051
    %v1053 = vpop.f32.mrb[0].mxu0
    %v1054 = vadd.f32 %v957, %v1053
    %v1055 = vpop.f32.mrb[0].mxu0
    %1056 = vdwg.mxu0
    %1057 = vmatprep.subr.mxu0 0.0
    %v1058 = vand.u32 %v568, 4294901760
    %v1059 = vsub.f32 %v568, %v1058
    %v1060 = vand.u32 %v1059, 4294901760
    %1061 = vmatpush1.msra.mxu0 %v1060
    %1062 = vmatprep.subr.mxu0 0.0
    %v1063 = vand.u32 %v569, 4294901760
    %v1064 = vsub.f32 %v569, %v1063
    %v1065 = vand.u32 %v1064, 4294901760
    %1066 = vmatpush1.msra.mxu0 %v1065
    %1067 = vmatprep.subr.mxu0 0.0
    %v1068 = vand.u32 %v570, 4294901760
    %v1069 = vsub.f32 %v570, %v1068
    %v1070 = vand.u32 %v1069, 4294901760
    %1071 = vmatpush1.msra.mxu0 %v1070
    %1072 = vmatprep.subr.mxu0 0.0
    %v1073 = vand.u32 %v571, 4294901760
    %v1074 = vsub.f32 %v571, %v1073
    %v1075 = vand.u32 %v1074, 4294901760
    %1076 = vmatpush1.msra.mxu0 %v1075
    %1077 = vmatprep.subr.mxu0 0.0
    %v1078 = vand.u32 %v572, 4294901760
    %v1079 = vsub.f32 %v572, %v1078
    %v1080 = vand.u32 %v1079, 4294901760
    %1081 = vmatpush1.msra.mxu0 %v1080
    %1082 = vmatprep.subr.mxu0 0.0
    %v1083 = vand.u32 %v573, 4294901760
    %v1084 = vsub.f32 %v573, %v1083
    %v1085 = vand.u32 %v1084, 4294901760
    %1086 = vmatpush1.msra.mxu0 %v1085
    %1087 = vmatprep.subr.mxu0 0.0
    %v1088 = vand.u32 %v574, 4294901760
    %v1089 = vsub.f32 %v574, %v1088
    %v1090 = vand.u32 %v1089, 4294901760
    %1091 = vmatpush1.msra.mxu0 %v1090
    %1092 = vmatprep.subr.mxu0 0.0
    %v1093 = vand.u32 %v575, 4294901760
    %v1094 = vsub.f32 %v575, %v1093
    %v1095 = vand.u32 %v1094, 4294901760
    %1096 = vmatpush1.msra.mxu0 %v1095
    %1097 = vmatprep.subr.mxu0 0.0
    %v1098 = vand.u32 %v576, 4294901760
    %v1099 = vsub.f32 %v576, %v1098
    %v1100 = vand.u32 %v1099, 4294901760
    %1101 = vmatpush1.msra.mxu0 %v1100
    %1102 = vmatprep.subr.mxu0 0.0
    %v1103 = vand.u32 %v577, 4294901760
    %v1104 = vsub.f32 %v577, %v1103
    %v1105 = vand.u32 %v1104, 4294901760
    %1106 = vmatpush1.msra.mxu0 %v1105
    %1107 = vmatprep.subr.mxu0 0.0
    %v1108 = vand.u32 %v578, 4294901760
    %v1109 = vsub.f32 %v578, %v1108
    %v1110 = vand.u32 %v1109, 4294901760
    %1111 = vmatpush1.msra.mxu0 %v1110
    %1112 = vmatprep.subr.mxu0 0.0
    %v1113 = vand.u32 %v579, 4294901760
    %v1114 = vsub.f32 %v579, %v1113
    %v1115 = vand.u32 %v1114, 4294901760
    %1116 = vmatpush1.msra.mxu0 %v1115
    %1117 = vmatprep.subr.mxu0 0.0
    %v1118 = vand.u32 %v580, 4294901760
    %v1119 = vsub.f32 %v580, %v1118
    %v1120 = vand.u32 %v1119, 4294901760
    %1121 = vmatpush1.msra.mxu0 %v1120
    %1122 = vmatprep.subr.mxu0 0.0
    %v1123 = vand.u32 %v581, 4294901760
    %v1124 = vsub.f32 %v581, %v1123
    %v1125 = vand.u32 %v1124, 4294901760
    %1126 = vmatpush1.msra.mxu0 %v1125
    %1127 = vmatprep.subr.mxu0 0.0
    %v1128 = vand.u32 %v582, 4294901760
    %v1129 = vsub.f32 %v582, %v1128
    %v1130 = vand.u32 %v1129, 4294901760
    %1131 = vmatpush1.msra.mxu0 %v1130
    %1132 = vmatprep.subr.mxu0 0.0
    %v1133 = vand.u32 %v583, 4294901760
    %v1134 = vsub.f32 %v583, %v1133
    %v1135 = vand.u32 %v1134, 4294901760
    %1136 = vmatpush1.msra.mxu0 %v1135
    %1137 = vmatprep.subr.mxu0 0.0
    %1138 = vmatpush1.msra.mxu0 0.0
    %1139 = vmatprep.subr.mxu0 0.0
    %1140 = vmatpush1.msra.mxu0 0.0
    %1141 = vmatprep.subr.mxu0 0.0
    %1142 = vmatpush1.msra.mxu0 0.0
    %1143 = vmatprep.subr.mxu0 0.0
    %1144 = vmatpush1.msra.mxu0 0.0
    %1145 = vmatprep.subr.mxu0 0.0
    %1146 = vmatpush1.msra.mxu0 0.0
    %1147 = vmatprep.subr.mxu0 0.0
    %1148 = vmatpush1.msra.mxu0 0.0
    %1149 = vmatprep.subr.mxu0 0.0
    %1150 = vmatpush1.msra.mxu0 0.0
    %1151 = vmatprep.subr.mxu0 0.0
    %1152 = vmatpush1.msra.mxu0 0.0
    %1153 = vmatprep.subr.mxu0 0.0
    %1154 = vmatpush1.msra.mxu0 0.0
    %1155 = vmatprep.subr.mxu0 0.0
    %1156 = vmatpush1.msra.mxu0 0.0
    %1157 = vmatprep.subr.mxu0 0.0
    %1158 = vmatpush1.msra.mxu0 0.0
    %1159 = vmatprep.subr.mxu0 0.0
    %1160 = vmatpush1.msra.mxu0 0.0
    %1161 = vmatprep.subr.mxu0 0.0
    %1162 = vmatpush1.msra.mxu0 0.0
    %1163 = vmatprep.subr.mxu0 0.0
    %1164 = vmatpush1.msra.mxu0 0.0
    %1165 = vmatprep.subr.mxu0 0.0
    %1166 = vmatpush1.msra.mxu0 0.0
    %1167 = vmatprep.subr.mxu0 0.0
    %1168 = vmatpush1.msra.mxu0 0.0
    %1169 = vmatprep.mubr.f32.mxu0 0.0
    %v1170 = vand.u32 %v559, 4294901760
    %1171 = vmatmul.mubr.f32.gmra.mrb[0].mxu0 %v1170
    %v1172 = vpop.f32.mrb[0].mxu0
    %v1173 = vadd.f32 %v1046, %v1172
    %v1174 = vpop.f32.mrb[0].mxu0
    %1175 = vmatprep.mubr.f32.mxu0 0.0
    %v1176 = vand.u32 %v565, 4294901760
    %1177 = vmatmul.mubr.f32.gmra.mrb[0].mxu0 %v1176
    %v1178 = vpop.f32.mrb[0].mxu0
    %v1179 = vadd.f32 %v1054, %v1178
    %v1180 = vpop.f32.mrb[0].mxu0
    %1181 = vdwg.mxu0
    %1182 = vmatprep.subr.mxu0 0.0
    %v1183 = vand.u32 %v568, 4294901760
    %1184 = vmatpush1.msra.mxu0 %v1183
    %1185 = vmatprep.subr.mxu0 0.0
    %v1186 = vand.u32 %v569, 4294901760
    %1187 = vmatpush1.msra.mxu0 %v1186
    %1188 = vmatprep.subr.mxu0 0.0
    %v1189 = vand.u32 %v570, 4294901760
    %1190 = vmatpush1.msra.mxu0 %v1189
    %1191 = vmatprep.subr.mxu0 0.0
    %v1192 = vand.u32 %v571, 4294901760
    %1193 = vmatpush1.msra.mxu0 %v1192
    %1194 = vmatprep.subr.mxu0 0.0
    %v1195 = vand.u32 %v572, 4294901760
    %1196 = vmatpush1.msra.mxu0 %v1195
    %1197 = vmatprep.subr.mxu0 0.0
    %v1198 = vand.u32 %v573, 4294901760
    %1199 = vmatpush1.msra.mxu0 %v1198
    %1200 = vmatprep.subr.mxu0 0.0
    %v1201 = vand.u32 %v574, 4294901760
    %1202 = vmatpush1.msra.mxu0 %v1201
    %1203 = vmatprep.subr.mxu0 0.0
    %v1204 = vand.u32 %v575, 4294901760
    %1205 = vmatpush1.msra.mxu0 %v1204
    %1206 = vmatprep.subr.mxu0 0.0
    %v1207 = vand.u32 %v576, 4294901760
    %1208 = vmatpush1.msra.mxu0 %v1207
    %1209 = vmatprep.subr.mxu0 0.0
    %v1210 = vand.u32 %v577, 4294901760
    %1211 = vmatpush1.msra.mxu0 %v1210
    %1212 = vmatprep.subr.mxu0 0.0
    %v1213 = vand.u32 %v578, 4294901760
    %1214 = vmatpush1.msra.mxu0 %v1213
    %1215 = vmatprep.subr.mxu0 0.0
    %v1216 = vand.u32 %v579, 4294901760
    %1217 = vmatpush1.msra.mxu0 %v1216
    %1218 = vmatprep.subr.mxu0 0.0
    %v1219 = vand.u32 %v580, 4294901760
    %1220 = vmatpush1.msra.mxu0 %v1219
    %1221 = vmatprep.subr.mxu0 0.0
    %v1222 = vand.u32 %v581, 4294901760
    %1223 = vmatpush1.msra.mxu0 %v1222
    %1224 = vmatprep.subr.mxu0 0.0
    %v1225 = vand.u32 %v582, 4294901760
    %1226 = vmatpush1.msra.mxu0 %v1225
    %1227 = vmatprep.subr.mxu0 0.0
    %v1228 = vand.u32 %v583, 4294901760
    %1229 = vmatpush1.msra.mxu0 %v1228
    %1230 = vmatprep.subr.mxu0 0.0
    %1231 = vmatpush1.msra.mxu0 0.0
    %1232 = vmatprep.subr.mxu0 0.0
    %1233 = vmatpush1.msra.mxu0 0.0
    %1234 = vmatprep.subr.mxu0 0.0
    %1235 = vmatpush1.msra.mxu0 0.0
    %1236 = vmatprep.subr.mxu0 0.0
    %1237 = vmatpush1.msra.mxu0 0.0
    %1238 = vmatprep.subr.mxu0 0.0
    %1239 = vmatpush1.msra.mxu0 0.0
    %1240 = vmatprep.subr.mxu0 0.0
    %1241 = vmatpush1.msra.mxu0 0.0
    %1242 = vmatprep.subr.mxu0 0.0
    %1243 = vmatpush1.msra.mxu0 0.0
    %1244 = vmatprep.subr.mxu0 0.0
    %1245 = vmatpush1.msra.mxu0 0.0
    %1246 = vmatprep.subr.mxu0 0.0
    %1247 = vmatpush1.msra.mxu0 0.0
    %1248 = vmatprep.subr.mxu0 0.0
    %1249 = vmatpush1.msra.mxu0 0.0
    %1250 = vmatprep.subr.mxu0 0.0
    %1251 = vmatpush1.msra.mxu0 0.0
    %1252 = vmatprep.subr.mxu0 0.0
    %1253 = vmatpush1.msra.mxu0 0.0
    %1254 = vmatprep.subr.mxu0 0.0
    %1255 = vmatpush1.msra.mxu0 0.0
    %1256 = vmatprep.subr.mxu0 0.0
    %1257 = vmatpush1.msra.mxu0 0.0
    %1258 = vmatprep.subr.mxu0 0.0
    %1259 = vmatpush1.msra.mxu0 0.0
    %1260 = vmatprep.subr.mxu0 0.0
    %1261 = vmatpush1.msra.mxu0 0.0
    %1262 = vmatprep.mubr.f32.mxu0 0.0
    %v1263 = vand.u32 %v559, 4294901760
    %1264 = vmatmul.mubr.f32.gmra.mrb[0].mxu0 %v1263
    %v1265 = vpop.f32.mrb[0].mxu0
    %v1266 = vadd.f32 %v1173, %v1265
    %v1267 = vpop.f32.mrb[0].mxu0
    %1268 = vmatprep.mubr.f32.mxu0 0.0
    %v1269 = vand.u32 %v565, 4294901760
    %1270 = vmatmul.mubr.f32.gmra.mrb[0].mxu0 %v1269
    %v1271 = vpop.f32.mrb[0].mxu0
    %v1272 = vadd.f32 %v1179, %v1271
    %v1273 = vpop.f32.mrb[0].mxu0
    %1274 = vdwg.mxu0
    %v1275 = vtanh.pop %v1266
    %v1276 = vtanh.pop %v1272
    %v1277 = vld [vmem:[#allocation3] sm:$0xff]
    %v1278 = vld [vmem:[#allocation3 + $0x8] sm:$0xff]
    %v1279 = vld [vmem:[#allocation3 + $0x10] sm:$0xff]
    %v1280 = vld [vmem:[#allocation3 + $0x18] sm:$0xff]
    %v1281 = vld [vmem:[#allocation3 + $0x20] sm:$0xff]
    %v1282 = vld [vmem:[#allocation3 + $0x28] sm:$0xff]
    %v1283 = vld [vmem:[#allocation3 + $0x30] sm:$0xff]
    %v1284 = vld [vmem:[#allocation3 + $0x38] sm:$0xff]
    %v1285 = vld [vmem:[#allocation3 + $0x40] sm:$0xff]
    %v1286 = vld [vmem:[#allocation3 + $0x48] sm:$0xff]
    %v1287 = vld [vmem:[#allocation3 + $0x50] sm:$0xff]
    %v1288 = vld [vmem:[#allocation3 + $0x58] sm:$0xff]
    %v1289 = vld [vmem:[#allocation3 + $0x60] sm:$0xff]
    %v1290 = vld [vmem:[#allocation3 + $0x68] sm:$0xff]
    %v1291 = vld [vmem:[#allocation3 + $0x70] sm:$0xff]
    %v1292 = vld [vmem:[#allocation3 + $0x78] sm:$0xff]
    %1293 = vmatprep.subr.mxu0 0.0
    %v1294 = vand.u32 %v1277, 4294901760
    %1295 = vmatpush1.msra.mxu0 %v1294
    %1296 = vmatprep.subr.mxu0 0.0
    %v1297 = vand.u32 %v1278, 4294901760
    %1298 = vmatpush1.msra.mxu0 %v1297
    %1299 = vmatprep.subr.mxu0 0.0
    %v1300 = vand.u32 %v1279, 4294901760
    %1301 = vmatpush1.msra.mxu0 %v1300
    %1302 = vmatprep.subr.mxu0 0.0
    %v1303 = vand.u32 %v1280, 4294901760
    %1304 = vmatpush1.msra.mxu0 %v1303
    %1305 = vmatprep.subr.mxu0 0.0
    %v1306 = vand.u32 %v1281, 4294901760
    %1307 = vmatpush1.msra.mxu0 %v1306
    %1308 = vmatprep.subr.mxu0 0.0
    %v1309 = vand.u32 %v1282, 4294901760
    %1310 = vmatpush1.msra.mxu0 %v1309
    %1311 = vmatprep.subr.mxu0 0.0
    %v1312 = vand.u32 %v1283, 4294901760
    %1313 = vmatpush1.msra.mxu0 %v1312
    %1314 = vmatprep.subr.mxu0 0.0
    %v1315 = vand.u32 %v1284, 4294901760
    %1316 = vmatpush1.msra.mxu0 %v1315
    %1317 = vmatprep.subr.mxu0 0.0
    %v1318 = vand.u32 %v1285, 4294901760
    %1319 = vmatpush1.msra.mxu0 %v1318
    %1320 = vmatprep.subr.mxu0 0.0
    %v1321 = vand.u32 %v1286, 4294901760
    %1322 = vmatpush1.msra.mxu0 %v1321
    %1323 = vmatprep.subr.mxu0 0.0
    %v1324 = vand.u32 %v1287, 4294901760
    %1325 = vmatpush1.msra.mxu0 %v1324
    %1326 = vmatprep.subr.mxu0 0.0
    %v1327 = vand.u32 %v1288, 4294901760
    %1328 = vmatpush1.msra.mxu0 %v1327
    %1329 = vmatprep.subr.mxu0 0.0
    %v1330 = vand.u32 %v1289, 4294901760
    %1331 = vmatpush1.msra.mxu0 %v1330
    %1332 = vmatprep.subr.mxu0 0.0
    %v1333 = vand.u32 %v1290, 4294901760
    %1334 = vmatpush1.msra.mxu0 %v1333
    %1335 = vmatprep.subr.mxu0 0.0
    %v1336 = vand.u32 %v1291, 4294901760
    %1337 = vmatpush1.msra.mxu0 %v1336
    %1338 = vmatprep.subr.mxu0 0.0
    %v1339 = vand.u32 %v1292, 4294901760
    %1340 = vmatpush1.msra.mxu0 %v1339
    %1341 = vmatprep.subr.mxu0 0.0
    %1342 = vmatpush1.msra.mxu0 0.0
    %1343 = vmatprep.subr.mxu0 0.0
    %1344 = vmatpush1.msra.mxu0 0.0
    %1345 = vmatprep.subr.mxu0 0.0
    %1346 = vmatpush1.msra.mxu0 0.0
    %1347 = vmatprep.subr.mxu0 0.0
    %1348 = vmatpush1.msra.mxu0 0.0
    %1349 = vmatprep.subr.mxu0 0.0
    %1350 = vmatpush1.msra.mxu0 0.0
    %1351 = vmatprep.subr.mxu0 0.0
    %1352 = vmatpush1.msra.mxu0 0.0
    %1353 = vmatprep.subr.mxu0 0.0
    %1354 = vmatpush1.msra.mxu0 0.0
    %1355 = vmatprep.subr.mxu0 0.0
    %1356 = vmatpush1.msra.mxu0 0.0
    %1357 = vmatprep.subr.mxu0 0.0
    %1358 = vmatpush1.msra.mxu0 0.0
    %1359 = vmatprep.subr.mxu0 0.0
    %1360 = vmatpush1.msra.mxu0 0.0
    %1361 = vmatprep.subr.mxu0 0.0
    %1362 = vmatpush1.msra.mxu0 0.0
    %1363 = vmatprep.subr.mxu0 0.0
    %1364 = vmatpush1.msra.mxu0 0.0
    %1365 = vmatprep.subr.mxu0 0.0
    %1366 = vmatpush1.msra.mxu0 0.0
    %1367 = vmatprep.subr.mxu0 0.0
    %1368 = vmatpush1.msra.mxu0 0.0
    %1369 = vmatprep.subr.mxu0 0.0
    %1370 = vmatpush1.msra.mxu0 0.0
    %1371 = vmatprep.subr.mxu0 0.0
    %1372 = vmatpush1.msra.mxu0 0.0
    %1373 = vmatprep.mubr.f32.mxu0 0.0
    %v1374 = vand.u32 %v1275, 4294901760
    %v1375 = vsub.f32 %v1275, %v1374
    %v1376 = vand.u32 %v1375, 4294901760
    %v1377 = vsub.f32 %v1375, %v1376
    %v1378 = vand.u32 %v1377, 4294901760
    %1379 = vmatmul.mubr.f32.gmra.mrb[0].mxu0 %v1378
    %v1380 = vpop.f32.mrb[0].mxu0
    %v1381 = vadd.f32 0.0, %v1380
    %v1382 = vpop.f32.mrb[0].mxu0
    %1383 = vdwg.mxu0
    %1384 = vmatprep.subr.mxu0 0.0
    %v1385 = vand.u32 %v1277, 4294901760
    %v1386 = vsub.f32 %v1277, %v1385
    %v1387 = vand.u32 %v1386, 4294901760
    %v1388 = vsub.f32 %v1386, %v1387
    %v1389 = vand.u32 %v1388, 4294901760
    %1390 = vmatpush1.msra.mxu0 %v1389
    %1391 = vmatprep.subr.mxu0 0.0
    %v1392 = vand.u32 %v1278, 4294901760
    %v1393 = vsub.f32 %v1278, %v1392
    %v1394 = vand.u32 %v1393, 4294901760
    %v1395 = vsub.f32 %v1393, %v1394
    %v1396 = vand.u32 %v1395, 4294901760
    %1397 = vmatpush1.msra.mxu0 %v1396
    %1398 = vmatprep.subr.mxu0 0.0
    %v1399 = vand.u32 %v1279, 4294901760
    %v1400 = vsub.f32 %v1279, %v1399
    %v1401 = vand.u32 %v1400, 4294901760
    %v1402 = vsub.f32 %v1400, %v1401
    %v1403 = vand.u32 %v1402, 4294901760
    %1404 = vmatpush1.msra.mxu0 %v1403
    %1405 = vmatprep.subr.mxu0 0.0
    %v1406 = vand.u32 %v1280, 4294901760
    %v1407 = vsub.f32 %v1280, %v1406
    %v1408 = vand.u32 %v1407, 4294901760
    %v1409 = vsub.f32 %v1407, %v1408
    %v1410 = vand.u32 %v1409, 4294901760
    %1411 = vmatpush1.msra.mxu0 %v1410
    %1412 = vmatprep.subr.mxu0 0.0
    %v1413 = vand.u32 %v1281, 4294901760
    %v1414 = vsub.f32 %v1281, %v1413
    %v1415 = vand.u32 %v1414, 4294901760
    %v1416 = vsub.f32 %v1414, %v1415
    %v1417 = vand.u32 %v1416, 4294901760
    %1418 = vmatpush1.msra.mxu0 %v1417
    %1419 = vmatprep.subr.mxu0 0.0
    %v1420 = vand.u32 %v1282, 4294901760
    %v1421 = vsub.f32 %v1282, %v1420
    %v1422 = vand.u32 %v1421, 4294901760
    %v1423 = vsub.f32 %v1421, %v1422
    %v1424 = vand.u32 %v1423, 4294901760
    %1425 = vmatpush1.msra.mxu0 %v1424
    %1426 = vmatprep.subr.mxu0 0.0
    %v1427 = vand.u32 %v1283, 4294901760
    %v1428 = vsub.f32 %v1283, %v1427
    %v1429 = vand.u32 %v1428, 4294901760
    %v1430 = vsub.f32 %v1428, %v1429
    %v1431 = vand.u32 %v1430, 4294901760
    %1432 = vmatpush1.msra.mxu0 %v1431
    %1433 = vmatprep.subr.mxu0 0.0
    %v1434 = vand.u32 %v1284, 4294901760
    %v1435 = vsub.f32 %v1284, %v1434
    %v1436 = vand.u32 %v1435, 4294901760
    %v1437 = vsub.f32 %v1435, %v1436
    %v1438 = vand.u32 %v1437, 4294901760
    %1439 = vmatpush1.msra.mxu0 %v1438
    %1440 = vmatprep.subr.mxu0 0.0
    %v1441 = vand.u32 %v1285, 4294901760
    %v1442 = vsub.f32 %v1285, %v1441
    %v1443 = vand.u32 %v1442, 4294901760
    %v1444 = vsub.f32 %v1442, %v1443
    %v1445 = vand.u32 %v1444, 4294901760
    %1446 = vmatpush1.msra.mxu0 %v1445
    %1447 = vmatprep.subr.mxu0 0.0
    %v1448 = vand.u32 %v1286, 4294901760
    %v1449 = vsub.f32 %v1286, %v1448
    %v1450 = vand.u32 %v1449, 4294901760
    %v1451 = vsub.f32 %v1449, %v1450
    %v1452 = vand.u32 %v1451, 4294901760
    %1453 = vmatpush1.msra.mxu0 %v1452
    %1454 = vmatprep.subr.mxu0 0.0
    %v1455 = vand.u32 %v1287, 4294901760
    %v1456 = vsub.f32 %v1287, %v1455
    %v1457 = vand.u32 %v1456, 4294901760
    %v1458 = vsub.f32 %v1456, %v1457
    %v1459 = vand.u32 %v1458, 4294901760
    %1460 = vmatpush1.msra.mxu0 %v1459
    %1461 = vmatprep.subr.mxu0 0.0
    %v1462 = vand.u32 %v1288, 4294901760
    %v1463 = vsub.f32 %v1288, %v1462
    %v1464 = vand.u32 %v1463, 4294901760
    %v1465 = vsub.f32 %v1463, %v1464
    %v1466 = vand.u32 %v1465, 4294901760
    %1467 = vmatpush1.msra.mxu0 %v1466
    %1468 = vmatprep.subr.mxu0 0.0
    %v1469 = vand.u32 %v1289, 4294901760
    %v1470 = vsub.f32 %v1289, %v1469
    %v1471 = vand.u32 %v1470, 4294901760
    %v1472 = vsub.f32 %v1470, %v1471
    %v1473 = vand.u32 %v1472, 4294901760
    %1474 = vmatpush1.msra.mxu0 %v1473
    %1475 = vmatprep.subr.mxu0 0.0
    %v1476 = vand.u32 %v1290, 4294901760
    %v1477 = vsub.f32 %v1290, %v1476
    %v1478 = vand.u32 %v1477, 4294901760
    %v1479 = vsub.f32 %v1477, %v1478
    %v1480 = vand.u32 %v1479, 4294901760
    %1481 = vmatpush1.msra.mxu0 %v1480
    %1482 = vmatprep.subr.mxu0 0.0
    %v1483 = vand.u32 %v1291, 4294901760
    %v1484 = vsub.f32 %v1291, %v1483
    %v1485 = vand.u32 %v1484, 4294901760
    %v1486 = vsub.f32 %v1484, %v1485
    %v1487 = vand.u32 %v1486, 4294901760
    %1488 = vmatpush1.msra.mxu0 %v1487
    %1489 = vmatprep.subr.mxu0 0.0
    %v1490 = vand.u32 %v1292, 4294901760
    %v1491 = vsub.f32 %v1292, %v1490
    %v1492 = vand.u32 %v1491, 4294901760
    %v1493 = vsub.f32 %v1491, %v1492
    %v1494 = vand.u32 %v1493, 4294901760
    %1495 = vmatpush1.msra.mxu0 %v1494
    %1496 = vmatprep.subr.mxu0 0.0
    %1497 = vmatpush1.msra.mxu0 0.0
    %1498 = vmatprep.subr.mxu0 0.0
    %1499 = vmatpush1.msra.mxu0 0.0
    %1500 = vmatprep.subr.mxu0 0.0
    %1501 = vmatpush1.msra.mxu0 0.0
    %1502 = vmatprep.subr.mxu0 0.0
    %1503 = vmatpush1.msra.mxu0 0.0
    %1504 = vmatprep.subr.mxu0 0.0
    %1505 = vmatpush1.msra.mxu0 0.0
    %1506 = vmatprep.subr.mxu0 0.0
    %1507 = vmatpush1.msra.mxu0 0.0
    %1508 = vmatprep.subr.mxu0 0.0
    %1509 = vmatpush1.msra.mxu0 0.0
    %1510 = vmatprep.subr.mxu0 0.0
    %1511 = vmatpush1.msra.mxu0 0.0
    %1512 = vmatprep.subr.mxu0 0.0
    %1513 = vmatpush1.msra.mxu0 0.0
    %1514 = vmatprep.subr.mxu0 0.0
    %1515 = vmatpush1.msra.mxu0 0.0
    %1516 = vmatprep.subr.mxu0 0.0
    %1517 = vmatpush1.msra.mxu0 0.0
    %1518 = vmatprep.subr.mxu0 0.0
    %1519 = vmatpush1.msra.mxu0 0.0
    %1520 = vmatprep.subr.mxu0 0.0
    %1521 = vmatpush1.msra.mxu0 0.0
    %1522 = vmatprep.subr.mxu0 0.0
    %1523 = vmatpush1.msra.mxu0 0.0
    %1524 = vmatprep.subr.mxu0 0.0
    %1525 = vmatpush1.msra.mxu0 0.0
    %1526 = vmatprep.subr.mxu0 0.0
    %1527 = vmatpush1.msra.mxu0 0.0
    %1528 = vmatprep.mubr.f32.mxu0 0.0
    %v1529 = vand.u32 %v1275, 4294901760
    %1530 = vmatmul.mubr.f32.gmra.mrb[0].mxu0 %v1529
    %v1531 = vpop.f32.mrb[0].mxu0
    %v1532 = vadd.f32 %v1381, %v1531
    %v1533 = vpop.f32.mrb[0].mxu0
    %1534 = vdwg.mxu0
    %1535 = vmatprep.subr.mxu0 0.0
    %v1536 = vand.u32 %v1277, 4294901760
    %v1537 = vsub.f32 %v1277, %v1536
    %1538 = vmatpush1.msra.mxu0 %v1537
    %1539 = vmatprep.subr.mxu0 0.0
    %v1540 = vand.u32 %v1278, 4294901760
    %v1541 = vsub.f32 %v1278, %v1540
    %1542 = vmatpush1.msra.mxu0 %v1541
    %1543 = vmatprep.subr.mxu0 0.0
    %v1544 = vand.u32 %v1279, 4294901760
    %v1545 = vsub.f32 %v1279, %v1544
    %1546 = vmatpush1.msra.mxu0 %v1545
    %1547 = vmatprep.subr.mxu0 0.0
    %v1548 = vand.u32 %v1280, 4294901760
    %v1549 = vsub.f32 %v1280, %v1548
    %1550 = vmatpush1.msra.mxu0 %v1549
    %1551 = vmatprep.subr.mxu0 0.0
    %v1552 = vand.u32 %v1281, 4294901760
    %v1553 = vsub.f32 %v1281, %v1552
    %1554 = vmatpush1.msra.mxu0 %v1553
    %1555 = vmatprep.subr.mxu0 0.0
    %v1556 = vand.u32 %v1282, 4294901760
    %v1557 = vsub.f32 %v1282, %v1556
    %1558 = vmatpush1.msra.mxu0 %v1557
    %1559 = vmatprep.subr.mxu0 0.0
    %v1560 = vand.u32 %v1283, 4294901760
    %v1561 = vsub.f32 %v1283, %v1560
    %1562 = vmatpush1.msra.mxu0 %v1561
    %1563 = vmatprep.subr.mxu0 0.0
    %v1564 = vand.u32 %v1284, 4294901760
    %v1565 = vsub.f32 %v1284, %v1564
    %1566 = vmatpush1.msra.mxu0 %v1565
    %1567 = vmatprep.subr.mxu0 0.0
    %v1568 = vand.u32 %v1285, 4294901760
    %v1569 = vsub.f32 %v1285, %v1568
    %1570 = vmatpush1.msra.mxu0 %v1569
    %1571 = vmatprep.subr.mxu0 0.0
    %v1572 = vand.u32 %v1286, 4294901760
    %v1573 = vsub.f32 %v1286, %v1572
    %1574 = vmatpush1.msra.mxu0 %v1573
    %1575 = vmatprep.subr.mxu0 0.0
    %v1576 = vand.u32 %v1287, 4294901760
    %v1577 = vsub.f32 %v1287, %v1576
    %1578 = vmatpush1.msra.mxu0 %v1577
    %1579 = vmatprep.subr.mxu0 0.0
    %v1580 = vand.u32 %v1288, 4294901760
    %v1581 = vsub.f32 %v1288, %v1580
    %1582 = vmatpush1.msra.mxu0 %v1581
    %1583 = vmatprep.subr.mxu0 0.0
    %v1584 = vand.u32 %v1289, 4294901760
    %v1585 = vsub.f32 %v1289, %v1584
    %1586 = vmatpush1.msra.mxu0 %v1585
    %1587 = vmatprep.subr.mxu0 0.0
    %v1588 = vand.u32 %v1290, 4294901760
    %v1589 = vsub.f32 %v1290, %v1588
    %1590 = vmatpush1.msra.mxu0 %v1589
    %1591 = vmatprep.subr.mxu0 0.0
    %v1592 = vand.u32 %v1291, 4294901760
    %v1593 = vsub.f32 %v1291, %v1592
    %1594 = vmatpush1.msra.mxu0 %v1593
    %1595 = vmatprep.subr.mxu0 0.0
    %v1596 = vand.u32 %v1292, 4294901760
    %v1597 = vsub.f32 %v1292, %v1596
    %1598 = vmatpush1.msra.mxu0 %v1597
    %1599 = vmatprep.subr.mxu0 0.0
    %1600 = vmatpush1.msra.mxu0 0.0
    %1601 = vmatprep.subr.mxu0 0.0
    %1602 = vmatpush1.msra.mxu0 0.0
    %1603 = vmatprep.subr.mxu0 0.0
    %1604 = vmatpush1.msra.mxu0 0.0
    %1605 = vmatprep.subr.mxu0 0.0
    %1606 = vmatpush1.msra.mxu0 0.0
    %1607 = vmatprep.subr.mxu0 0.0
    %1608 = vmatpush1.msra.mxu0 0.0
    %1609 = vmatprep.subr.mxu0 0.0
    %1610 = vmatpush1.msra.mxu0 0.0
    %1611 = vmatprep.subr.mxu0 0.0
    %1612 = vmatpush1.msra.mxu0 0.0
    %1613 = vmatprep.subr.mxu0 0.0
    %1614 = vmatpush1.msra.mxu0 0.0
    %1615 = vmatprep.subr.mxu0 0.0
    %1616 = vmatpush1.msra.mxu0 0.0
    %1617 = vmatprep.subr.mxu0 0.0
    %1618 = vmatpush1.msra.mxu0 0.0
    %1619 = vmatprep.subr.mxu0 0.0
    %1620 = vmatpush1.msra.mxu0 0.0
    %1621 = vmatprep.subr.mxu0 0.0
    %1622 = vmatpush1.msra.mxu0 0.0
    %1623 = vmatprep.subr.mxu0 0.0
    %1624 = vmatpush1.msra.mxu0 0.0
    %1625 = vmatprep.subr.mxu0 0.0
    %1626 = vmatpush1.msra.mxu0 0.0
    %1627 = vmatprep.subr.mxu0 0.0
    %1628 = vmatpush1.msra.mxu0 0.0
    %1629 = vmatprep.subr.mxu0 0.0
    %1630 = vmatpush1.msra.mxu0 0.0
    %1631 = vmatprep.mubr.f32.mxu0 0.0
    %v1632 = vand.u32 %v1275, 4294901760
    %v1633 = vsub.f32 %v1275, %v1632
    %1634 = vmatmul.mubr.f32.gmra.mrb[0].mxu0 %v1633
    %v1635 = vpop.f32.mrb[0].mxu0
    %v1636 = vadd.f32 %v1532, %v1635
    %v1637 = vpop.f32.mrb[0].mxu0
    %1638 = vdwg.mxu0
    %1639 = vmatprep.subr.mxu0 0.0
    %v1640 = vand.u32 %v1277, 4294901760
    %1641 = vmatpush1.msra.mxu0 %v1640
    %1642 = vmatprep.subr.mxu0 0.0
    %v1643 = vand.u32 %v1278, 4294901760
    %1644 = vmatpush1.msra.mxu0 %v1643
    %1645 = vmatprep.subr.mxu0 0.0
    %v1646 = vand.u32 %v1279, 4294901760
    %1647 = vmatpush1.msra.mxu0 %v1646
    %1648 = vmatprep.subr.mxu0 0.0
    %v1649 = vand.u32 %v1280, 4294901760
    %1650 = vmatpush1.msra.mxu0 %v1649
    %1651 = vmatprep.subr.mxu0 0.0
    %v1652 = vand.u32 %v1281, 4294901760
    %1653 = vmatpush1.msra.mxu0 %v1652
    %1654 = vmatprep.subr.mxu0 0.0
    %v1655 = vand.u32 %v1282, 4294901760
    %1656 = vmatpush1.msra.mxu0 %v1655
    %1657 = vmatprep.subr.mxu0 0.0
    %v1658 = vand.u32 %v1283, 4294901760
    %1659 = vmatpush1.msra.mxu0 %v1658
    %1660 = vmatprep.subr.mxu0 0.0
    %v1661 = vand.u32 %v1284, 4294901760
    %1662 = vmatpush1.msra.mxu0 %v1661
    %1663 = vmatprep.subr.mxu0 0.0
    %v1664 = vand.u32 %v1285, 4294901760
    %1665 = vmatpush1.msra.mxu0 %v1664
    %1666 = vmatprep.subr.mxu0 0.0
    %v1667 = vand.u32 %v1286, 4294901760
    %1668 = vmatpush1.msra.mxu0 %v1667
    %1669 = vmatprep.subr.mxu0 0.0
    %v1670 = vand.u32 %v1287, 4294901760
    %1671 = vmatpush1.msra.mxu0 %v1670
    %1672 = vmatprep.subr.mxu0 0.0
    %v1673 = vand.u32 %v1288, 4294901760
    %1674 = vmatpush1.msra.mxu0 %v1673
    %1675 = vmatprep.subr.mxu0 0.0
    %v1676 = vand.u32 %v1289, 4294901760
    %1677 = vmatpush1.msra.mxu0 %v1676
    %1678 = vmatprep.subr.mxu0 0.0
    %v1679 = vand.u32 %v1290, 4294901760
    %1680 = vmatpush1.msra.mxu0 %v1679
    %1681 = vmatprep.subr.mxu0 0.0
    %v1682 = vand.u32 %v1291, 4294901760
    %1683 = vmatpush1.msra.mxu0 %v1682
    %1684 = vmatprep.subr.mxu0 0.0
    %v1685 = vand.u32 %v1292, 4294901760
    %1686 = vmatpush1.msra.mxu0 %v1685
    %1687 = vmatprep.subr.mxu0 0.0
    %1688 = vmatpush1.msra.mxu0 0.0
    %1689 = vmatprep.subr.mxu0 0.0
    %1690 = vmatpush1.msra.mxu0 0.0
    %1691 = vmatprep.subr.mxu0 0.0
    %1692 = vmatpush1.msra.mxu0 0.0
    %1693 = vmatprep.subr.mxu0 0.0
    %1694 = vmatpush1.msra.mxu0 0.0
    %1695 = vmatprep.subr.mxu0 0.0
    %1696 = vmatpush1.msra.mxu0 0.0
    %1697 = vmatprep.subr.mxu0 0.0
    %1698 = vmatpush1.msra.mxu0 0.0
    %1699 = vmatprep.subr.mxu0 0.0
    %1700 = vmatpush1.msra.mxu0 0.0
    %1701 = vmatprep.subr.mxu0 0.0
    %1702 = vmatpush1.msra.mxu0 0.0
    %1703 = vmatprep.subr.mxu0 0.0
    %1704 = vmatpush1.msra.mxu0 0.0
    %1705 = vmatprep.subr.mxu0 0.0
    %1706 = vmatpush1.msra.mxu0 0.0
    %1707 = vmatprep.subr.mxu0 0.0
    %1708 = vmatpush1.msra.mxu0 0.0
    %1709 = vmatprep.subr.mxu0 0.0
    %1710 = vmatpush1.msra.mxu0 0.0
    %1711 = vmatprep.subr.mxu0 0.0
    %1712 = vmatpush1.msra.mxu0 0.0
    %1713 = vmatprep.subr.mxu0 0.0
    %1714 = vmatpush1.msra.mxu0 0.0
    %1715 = vmatprep.subr.mxu0 0.0
    %1716 = vmatpush1.msra.mxu0 0.0
    %1717 = vmatprep.subr.mxu0 0.0
    %1718 = vmatpush1.msra.mxu0 0.0
    %1719 = vmatprep.mubr.f32.mxu0 0.0
    %v1720 = vand.u32 %v1275, 4294901760
    %v1721 = vsub.f32 %v1275, %v1720
    %v1722 = vand.u32 %v1721, 4294901760
    %1723 = vmatmul.mubr.f32.gmra.mrb[0].mxu0 %v1722
    %v1724 = vpop.f32.mrb[0].mxu0
    %v1725 = vadd.f32 %v1636, %v1724
    %v1726 = vpop.f32.mrb[0].mxu0
    %1727 = vdwg.mxu0
    %1728 = vmatprep.subr.mxu0 0.0
    %v1729 = vand.u32 %v1277, 4294901760
    %v1730 = vsub.f32 %v1277, %v1729
    %v1731 = vand.u32 %v1730, 4294901760
    %1732 = vmatpush1.msra.mxu0 %v1731
    %1733 = vmatprep.subr.mxu0 0.0
    %v1734 = vand.u32 %v1278, 4294901760
    %v1735 = vsub.f32 %v1278, %v1734
    %v1736 = vand.u32 %v1735, 4294901760
    %1737 = vmatpush1.msra.mxu0 %v1736
    %1738 = vmatprep.subr.mxu0 0.0
    %v1739 = vand.u32 %v1279, 4294901760
    %v1740 = vsub.f32 %v1279, %v1739
    %v1741 = vand.u32 %v1740, 4294901760
    %1742 = vmatpush1.msra.mxu0 %v1741
    %1743 = vmatprep.subr.mxu0 0.0
    %v1744 = vand.u32 %v1280, 4294901760
    %v1745 = vsub.f32 %v1280, %v1744
    %v1746 = vand.u32 %v1745, 4294901760
    %1747 = vmatpush1.msra.mxu0 %v1746
    %1748 = vmatprep.subr.mxu0 0.0
    %v1749 = vand.u32 %v1281, 4294901760
    %v1750 = vsub.f32 %v1281, %v1749
    %v1751 = vand.u32 %v1750, 4294901760
    %1752 = vmatpush1.msra.mxu0 %v1751
    %1753 = vmatprep.subr.mxu0 0.0
    %v1754 = vand.u32 %v1282, 4294901760
    %v1755 = vsub.f32 %v1282, %v1754
    %v1756 = vand.u32 %v1755, 4294901760
    %1757 = vmatpush1.msra.mxu0 %v1756
    %1758 = vmatprep.subr.mxu0 0.0
    %v1759 = vand.u32 %v1283, 4294901760
    %v1760 = vsub.f32 %v1283, %v1759
    %v1761 = vand.u32 %v1760, 4294901760
    %1762 = vmatpush1.msra.mxu0 %v1761
    %1763 = vmatprep.subr.mxu0 0.0
    %v1764 = vand.u32 %v1284, 4294901760
    %v1765 = vsub.f32 %v1284, %v1764
    %v1766 = vand.u32 %v1765, 4294901760
    %1767 = vmatpush1.msra.mxu0 %v1766
    %1768 = vmatprep.subr.mxu0 0.0
    %v1769 = vand.u32 %v1285, 4294901760
    %v1770 = vsub.f32 %v1285, %v1769
    %v1771 = vand.u32 %v1770, 4294901760
    %1772 = vmatpush1.msra.mxu0 %v1771
    %1773 = vmatprep.subr.mxu0 0.0
    %v1774 = vand.u32 %v1286, 4294901760
    %v1775 = vsub.f32 %v1286, %v1774
    %v1776 = vand.u32 %v1775, 4294901760
    %1777 = vmatpush1.msra.mxu0 %v1776
    %1778 = vmatprep.subr.mxu0 0.0
    %v1779 = vand.u32 %v1287, 4294901760
    %v1780 = vsub.f32 %v1287, %v1779
    %v1781 = vand.u32 %v1780, 4294901760
    %1782 = vmatpush1.msra.mxu0 %v1781
    %1783 = vmatprep.subr.mxu0 0.0
    %v1784 = vand.u32 %v1288, 4294901760
    %v1785 = vsub.f32 %v1288, %v1784
    %v1786 = vand.u32 %v1785, 4294901760
    %1787 = vmatpush1.msra.mxu0 %v1786
    %1788 = vmatprep.subr.mxu0 0.0
    %v1789 = vand.u32 %v1289, 4294901760
    %v1790 = vsub.f32 %v1289, %v1789
    %v1791 = vand.u32 %v1790, 4294901760
    %1792 = vmatpush1.msra.mxu0 %v1791
    %1793 = vmatprep.subr.mxu0 0.0
    %v1794 = vand.u32 %v1290, 4294901760
    %v1795 = vsub.f32 %v1290, %v1794
    %v1796 = vand.u32 %v1795, 4294901760
    %1797 = vmatpush1.msra.mxu0 %v1796
    %1798 = vmatprep.subr.mxu0 0.0
    %v1799 = vand.u32 %v1291, 4294901760
    %v1800 = vsub.f32 %v1291, %v1799
    %v1801 = vand.u32 %v1800, 4294901760
    %1802 = vmatpush1.msra.mxu0 %v1801
    %1803 = vmatprep.subr.mxu0 0.0
    %v1804 = vand.u32 %v1292, 4294901760
    %v1805 = vsub.f32 %v1292, %v1804
    %v1806 = vand.u32 %v1805, 4294901760
    %1807 = vmatpush1.msra.mxu0 %v1806
    %1808 = vmatprep.subr.mxu0 0.0
    %1809 = vmatpush1.msra.mxu0 0.0
    %1810 = vmatprep.subr.mxu0 0.0
    %1811 = vmatpush1.msra.mxu0 0.0
    %1812 = vmatprep.subr.mxu0 0.0
    %1813 = vmatpush1.msra.mxu0 0.0
    %1814 = vmatprep.subr.mxu0 0.0
    %1815 = vmatpush1.msra.mxu0 0.0
    %1816 = vmatprep.subr.mxu0 0.0
    %1817 = vmatpush1.msra.mxu0 0.0
    %1818 = vmatprep.subr.mxu0 0.0
    %1819 = vmatpush1.msra.mxu0 0.0
    %1820 = vmatprep.subr.mxu0 0.0
    %1821 = vmatpush1.msra.mxu0 0.0
    %1822 = vmatprep.subr.mxu0 0.0
    %1823 = vmatpush1.msra.mxu0 0.0
    %1824 = vmatprep.subr.mxu0 0.0
    %1825 = vmatpush1.msra.mxu0 0.0
    %1826 = vmatprep.subr.mxu0 0.0
    %1827 = vmatpush1.msra.mxu0 0.0
    %1828 = vmatprep.subr.mxu0 0.0
    %1829 = vmatpush1.msra.mxu0 0.0
    %1830 = vmatprep.subr.mxu0 0.0
    %1831 = vmatpush1.msra.mxu0 0.0
    %1832 = vmatprep.subr.mxu0 0.0
    %1833 = vmatpush1.msra.mxu0 0.0
    %1834 = vmatprep.subr.mxu0 0.0
    %1835 = vmatpush1.msra.mxu0 0.0
    %1836 = vmatprep.subr.mxu0 0.0
    %1837 = vmatpush1.msra.mxu0 0.0
    %1838 = vmatprep.subr.mxu0 0.0
    %1839 = vmatpush1.msra.mxu0 0.0
    %1840 = vmatprep.mubr.f32.mxu0 0.0
    %v1841 = vand.u32 %v1275, 4294901760
    %1842 = vmatmul.mubr.f32.gmra.mrb[0].mxu0 %v1841
    %v1843 = vpop.f32.mrb[0].mxu0
    %v1844 = vadd.f32 %v1725, %v1843
    %v1845 = vpop.f32.mrb[0].mxu0
    %1846 = vdwg.mxu0
    %1847 = vmatprep.subr.mxu0 0.0
    %v1848 = vand.u32 %v1277, 4294901760
    %1849 = vmatpush1.msra.mxu0 %v1848
    %1850 = vmatprep.subr.mxu0 0.0
    %v1851 = vand.u32 %v1278, 4294901760
    %1852 = vmatpush1.msra.mxu0 %v1851
    %1853 = vmatprep.subr.mxu0 0.0
    %v1854 = vand.u32 %v1279, 4294901760
    %1855 = vmatpush1.msra.mxu0 %v1854
    %1856 = vmatprep.subr.mxu0 0.0
    %v1857 = vand.u32 %v1280, 4294901760
    %1858 = vmatpush1.msra.mxu0 %v1857
    %1859 = vmatprep.subr.mxu0 0.0
    %v1860 = vand.u32 %v1281, 4294901760
    %1861 = vmatpush1.msra.mxu0 %v1860
    %1862 = vmatprep.subr.mxu0 0.0
    %v1863 = vand.u32 %v1282, 4294901760
    %1864 = vmatpush1.msra.mxu0 %v1863
    %1865 = vmatprep.subr.mxu0 0.0
    %v1866 = vand.u32 %v1283, 4294901760
    %1867 = vmatpush1.msra.mxu0 %v1866
    %1868 = vmatprep.subr.mxu0 0.0
    %v1869 = vand.u32 %v1284, 4294901760
    %1870 = vmatpush1.msra.mxu0 %v1869
    %1871 = vmatprep.subr.mxu0 0.0
    %v1872 = vand.u32 %v1285, 4294901760
    %1873 = vmatpush1.msra.mxu0 %v1872
    %1874 = vmatprep.subr.mxu0 0.0
    %v1875 = vand.u32 %v1286, 4294901760
    %1876 = vmatpush1.msra.mxu0 %v1875
    %1877 = vmatprep.subr.mxu0 0.0
    %v1878 = vand.u32 %v1287, 4294901760
    %1879 = vmatpush1.msra.mxu0 %v1878
    %1880 = vmatprep.subr.mxu0 0.0
    %v1881 = vand.u32 %v1288, 4294901760
    %1882 = vmatpush1.msra.mxu0 %v1881
    %1883 = vmatprep.subr.mxu0 0.0
    %v1884 = vand.u32 %v1289, 4294901760
    %1885 = vmatpush1.msra.mxu0 %v1884
    %1886 = vmatprep.subr.mxu0 0.0
    %v1887 = vand.u32 %v1290, 4294901760
    %1888 = vmatpush1.msra.mxu0 %v1887
    %1889 = vmatprep.subr.mxu0 0.0
    %v1890 = vand.u32 %v1291, 4294901760
    %1891 = vmatpush1.msra.mxu0 %v1890
    %1892 = vmatprep.subr.mxu0 0.0
    %v1893 = vand.u32 %v1292, 4294901760
    %1894 = vmatpush1.msra.mxu0 %v1893
    %1895 = vmatprep.subr.mxu0 0.0
    %1896 = vmatpush1.msra.mxu0 0.0
    %1897 = vmatprep.subr.mxu0 0.0
    %1898 = vmatpush1.msra.mxu0 0.0
    %1899 = vmatprep.subr.mxu0 0.0
    %1900 = vmatpush1.msra.mxu0 0.0
    %1901 = vmatprep.subr.mxu0 0.0
    %1902 = vmatpush1.msra.mxu0 0.0
    %1903 = vmatprep.subr.mxu0 0.0
    %1904 = vmatpush1.msra.mxu0 0.0
    %1905 = vmatprep.subr.mxu0 0.0
    %1906 = vmatpush1.msra.mxu0 0.0
    %1907 = vmatprep.subr.mxu0 0.0
    %1908 = vmatpush1.msra.mxu0 0.0
    %1909 = vmatprep.subr.mxu0 0.0
    %1910 = vmatpush1.msra.mxu0 0.0
    %1911 = vmatprep.subr.mxu0 0.0
    %1912 = vmatpush1.msra.mxu0 0.0
    %1913 = vmatprep.subr.mxu0 0.0
    %1914 = vmatpush1.msra.mxu0 0.0
    %1915 = vmatprep.subr.mxu0 0.0
    %1916 = vmatpush1.msra.mxu0 0.0
    %1917 = vmatprep.subr.mxu0 0.0
    %1918 = vmatpush1.msra.mxu0 0.0
    %1919 = vmatprep.subr.mxu0 0.0
    %1920 = vmatpush1.msra.mxu0 0.0
    %1921 = vmatprep.subr.mxu0 0.0
    %1922 = vmatpush1.msra.mxu0 0.0
    %1923 = vmatprep.subr.mxu0 0.0
    %1924 = vmatpush1.msra.mxu0 0.0
    %1925 = vmatprep.subr.mxu0 0.0
    %1926 = vmatpush1.msra.mxu0 0.0
    %1927 = vmatprep.mubr.f32.mxu0 0.0
    %v1928 = vand.u32 %v1275, 4294901760
    %1929 = vmatmul.mubr.f32.gmra.mrb[0].mxu0 %v1928
    %v1930 = vpop.f32.mrb[0].mxu0
    %v1931 = vadd.f32 %v1844, %v1930
    %v1932 = vpop.f32.mrb[0].mxu0
    %1933 = vdwg.mxu0
    %v1934 = vmul.f32 %v1931, %v1276
    %v1935 = vld [vmem:[%s5] sm:$0xff]
    %v1936 = vld [vmem:[%s5 + $0x8] sm:$0xff]
    %v1937 = vld [vmem:[%s5 + $0x10] sm:$0xff]
    %v1938 = vld [vmem:[%s5 + $0x18] sm:$0xff]
    %v1939 = vld [vmem:[%s5 + $0x20] sm:$0xff]
    %v1940 = vld [vmem:[%s5 + $0x28] sm:$0xff]
    %v1941 = vld [vmem:[%s5 + $0x30] sm:$0xff]
    %v1942 = vld [vmem:[%s5 + $0x38] sm:$0xff]
    %v1943 = vld [vmem:[%s5 + $0x40] sm:$0xff]
    %v1944 = vld [vmem:[%s5 + $0x48] sm:$0xff]
    %v1945 = vld [vmem:[%s5 + $0x50] sm:$0xff]
    %v1946 = vld [vmem:[%s5 + $0x58] sm:$0xff]
    %v1947 = vld [vmem:[%s5 + $0x60] sm:$0xff]
    %v1948 = vld [vmem:[%s5 + $0x68] sm:$0xff]
    %v1949 = vld [vmem:[%s5 + $0x70] sm:$0xff]
    %v1950 = vld [vmem:[%s5 + $0x78] sm:$0xff]
    %s1951 = sld [smem:[#allocation2]]
    %v1952 = vstv %s1951
    %1953 = vmatprep.subr.mxu0 0.0
    %v1954 = vand.u32 %v1935, 4294901760
    %1955 = vmatpush1.msra.mxu0 %v1954
    %1956 = vmatprep.subr.mxu0 0.0
    %v1957 = vand.u32 %v1936, 4294901760
    %1958 = vmatpush1.msra.mxu0 %v1957
    %1959 = vmatprep.subr.mxu0 0.0
    %v1960 = vand.u32 %v1937, 4294901760
    %1961 = vmatpush1.msra.mxu0 %v1960
    %1962 = vmatprep.subr.mxu0 0.0
    %v1963 = vand.u32 %v1938, 4294901760
    %1964 = vmatpush1.msra.mxu0 %v1963
    %1965 = vmatprep.subr.mxu0 0.0
    %v1966 = vand.u32 %v1939, 4294901760
    %1967 = vmatpush1.msra.mxu0 %v1966
    %1968 = vmatprep.subr.mxu0 0.0
    %v1969 = vand.u32 %v1940, 4294901760
    %1970 = vmatpush1.msra.mxu0 %v1969
    %1971 = vmatprep.subr.mxu0 0.0
    %v1972 = vand.u32 %v1941, 4294901760
    %1973 = vmatpush1.msra.mxu0 %v1972
    %1974 = vmatprep.subr.mxu0 0.0
    %v1975 = vand.u32 %v1942, 4294901760
    %1976 = vmatpush1.msra.mxu0 %v1975
    %1977 = vmatprep.subr.mxu0 0.0
    %v1978 = vand.u32 %v1943, 4294901760
    %1979 = vmatpush1.msra.mxu0 %v1978
    %1980 = vmatprep.subr.mxu0 0.0
    %v1981 = vand.u32 %v1944, 4294901760
    %1982 = vmatpush1.msra.mxu0 %v1981
    %1983 = vmatprep.subr.mxu0 0.0
    %v1984 = vand.u32 %v1945, 4294901760
    %1985 = vmatpush1.msra.mxu0 %v1984
    %1986 = vmatprep.subr.mxu0 0.0
    %v1987 = vand.u32 %v1946, 4294901760
    %1988 = vmatpush1.msra.mxu0 %v1987
    %1989 = vmatprep.subr.mxu0 0.0
    %v1990 = vand.u32 %v1947, 4294901760
    %1991 = vmatpush1.msra.mxu0 %v1990
    %1992 = vmatprep.subr.mxu0 0.0
    %v1993 = vand.u32 %v1948, 4294901760
    %1994 = vmatpush1.msra.mxu0 %v1993
    %1995 = vmatprep.subr.mxu0 0.0
    %v1996 = vand.u32 %v1949, 4294901760
    %1997 = vmatpush1.msra.mxu0 %v1996
    %1998 = vmatprep.subr.mxu0 0.0
    %v1999 = vand.u32 %v1950, 4294901760
    %2000 = vmatpush1.msra.mxu0 %v1999
    %2001 = vmatprep.subr.mxu0 0.0
    %2002 = vmatpush1.msra.mxu0 0.0
    %2003 = vmatprep.subr.mxu0 0.0
    %2004 = vmatpush1.msra.mxu0 0.0
    %2005 = vmatprep.subr.mxu0 0.0
    %2006 = vmatpush1.msra.mxu0 0.0
    %2007 = vmatprep.subr.mxu0 0.0
    %2008 = vmatpush1.msra.mxu0 0.0
    %2009 = vmatprep.subr.mxu0 0.0
    %2010 = vmatpush1.msra.mxu0 0.0
    %2011 = vmatprep.subr.mxu0 0.0
    %2012 = vmatpush1.msra.mxu0 0.0
    %2013 = vmatprep.subr.mxu0 0.0
    %2014 = vmatpush1.msra.mxu0 0.0
    %2015 = vmatprep.subr.mxu0 0.0
    %2016 = vmatpush1.msra.mxu0 0.0
    %2017 = vmatprep.subr.mxu0 0.0
    %2018 = vmatpush1.msra.mxu0 0.0
    %2019 = vmatprep.subr.mxu0 0.0
    %2020 = vmatpush1.msra.mxu0 0.0
    %2021 = vmatprep.subr.mxu0 0.0
    %2022 = vmatpush1.msra.mxu0 0.0
    %2023 = vmatprep.subr.mxu0 0.0
    %2024 = vmatpush1.msra.mxu0 0.0
    %2025 = vmatprep.subr.mxu0 0.0
    %2026 = vmatpush1.msra.mxu0 0.0
    %2027 = vmatprep.subr.mxu0 0.0
    %2028 = vmatpush1.msra.mxu0 0.0
    %2029 = vmatprep.subr.mxu0 0.0
    %2030 = vmatpush1.msra.mxu0 0.0
    %2031 = vmatprep.subr.mxu0 0.0
    %2032 = vmatpush1.msra.mxu0 0.0
    %2033 = vmatprep.mubr.f32.mxu0 0.0
    %v2034 = vand.u32 %v1934, 4294901760
    %v2035 = vsub.f32 %v1934, %v2034
    %v2036 = vand.u32 %v2035, 4294901760
    %v2037 = vsub.f32 %v2035, %v2036
    %v2038 = vand.u32 %v2037, 4294901760
    %2039 = vmatmul.mubr.f32.gmra.mrb[0].mxu0 %v2038
    %v2040 = vpop.f32.mrb[0].mxu0
    %v2041 = vadd.f32 %v1952, %v2040
    %v2042 = vpop.f32.mrb[0].mxu0
    %2043 = vdwg.mxu0
    %2044 = vmatprep.subr.mxu0 0.0
    %v2045 = vand.u32 %v1935, 4294901760
    %v2046 = vsub.f32 %v1935, %v2045
    %v2047 = vand.u32 %v2046, 4294901760
    %v2048 = vsub.f32 %v2046, %v2047
    %v2049 = vand.u32 %v2048, 4294901760
    %2050 = vmatpush1.msra.mxu0 %v2049
    %2051 = vmatprep.subr.mxu0 0.0
    %v2052 = vand.u32 %v1936, 4294901760
    %v2053 = vsub.f32 %v1936, %v2052
    %v2054 = vand.u32 %v2053, 4294901760
    %v2055 = vsub.f32 %v2053, %v2054
    %v2056 = vand.u32 %v2055, 4294901760
    %2057 = vmatpush1.msra.mxu0 %v2056
    %2058 = vmatprep.subr.mxu0 0.0
    %v2059 = vand.u32 %v1937, 4294901760
    %v2060 = vsub.f32 %v1937, %v2059
    %v2061 = vand.u32 %v2060, 4294901760
    %v2062 = vsub.f32 %v2060, %v2061
    %v2063 = vand.u32 %v2062, 4294901760
    %2064 = vmatpush1.msra.mxu0 %v2063
    %2065 = vmatprep.subr.mxu0 0.0
    %v2066 = vand.u32 %v1938, 4294901760
    %v2067 = vsub.f32 %v1938, %v2066
    %v2068 = vand.u32 %v2067, 4294901760
    %v2069 = vsub.f32 %v2067, %v2068
    %v2070 = vand.u32 %v2069, 4294901760
    %2071 = vmatpush1.msra.mxu0 %v2070
    %2072 = vmatprep.subr.mxu0 0.0
    %v2073 = vand.u32 %v1939, 4294901760
    %v2074 = vsub.f32 %v1939, %v2073
    %v2075 = vand.u32 %v2074, 4294901760
    %v2076 = vsub.f32 %v2074, %v2075
    %v2077 = vand.u32 %v2076, 4294901760
    %2078 = vmatpush1.msra.mxu0 %v2077
    %2079 = vmatprep.subr.mxu0 0.0
    %v2080 = vand.u32 %v1940, 4294901760
    %v2081 = vsub.f32 %v1940, %v2080
    %v2082 = vand.u32 %v2081, 4294901760
    %v2083 = vsub.f32 %v2081, %v2082
    %v2084 = vand.u32 %v2083, 4294901760
    %2085 = vmatpush1.msra.mxu0 %v2084
    %2086 = vmatprep.subr.mxu0 0.0
    %v2087 = vand.u32 %v1941, 4294901760
    %v2088 = vsub.f32 %v1941, %v2087
    %v2089 = vand.u32 %v2088, 4294901760
    %v2090 = vsub.f32 %v2088, %v2089
    %v2091 = vand.u32 %v2090, 4294901760
    %2092 = vmatpush1.msra.mxu0 %v2091
    %2093 = vmatprep.subr.mxu0 0.0
    %v2094 = vand.u32 %v1942, 4294901760
    %v2095 = vsub.f32 %v1942, %v2094
    %v2096 = vand.u32 %v2095, 4294901760
    %v2097 = vsub.f32 %v2095, %v2096
    %v2098 = vand.u32 %v2097, 4294901760
    %2099 = vmatpush1.msra.mxu0 %v2098
    %2100 = vmatprep.subr.mxu0 0.0
    %v2101 = vand.u32 %v1943, 4294901760
    %v2102 = vsub.f32 %v1943, %v2101
    %v2103 = vand.u32 %v2102, 4294901760
    %v2104 = vsub.f32 %v2102, %v2103
    %v2105 = vand.u32 %v2104, 4294901760
    %2106 = vmatpush1.msra.mxu0 %v2105
    %2107 = vmatprep.subr.mxu0 0.0
    %v2108 = vand.u32 %v1944, 4294901760
    %v2109 = vsub.f32 %v1944, %v2108
    %v2110 = vand.u32 %v2109, 4294901760
    %v2111 = vsub.f32 %v2109, %v2110
    %v2112 = vand.u32 %v2111, 4294901760
    %2113 = vmatpush1.msra.mxu0 %v2112
    %2114 = vmatprep.subr.mxu0 0.0
    %v2115 = vand.u32 %v1945, 4294901760
    %v2116 = vsub.f32 %v1945, %v2115
    %v2117 = vand.u32 %v2116, 4294901760
    %v2118 = vsub.f32 %v2116, %v2117
    %v2119 = vand.u32 %v2118, 4294901760
    %2120 = vmatpush1.msra.mxu0 %v2119
    %2121 = vmatprep.subr.mxu0 0.0
    %v2122 = vand.u32 %v1946, 4294901760
    %v2123 = vsub.f32 %v1946, %v2122
    %v2124 = vand.u32 %v2123, 4294901760
    %v2125 = vsub.f32 %v2123, %v2124
    %v2126 = vand.u32 %v2125, 4294901760
    %2127 = vmatpush1.msra.mxu0 %v2126
    %2128 = vmatprep.subr.mxu0 0.0
    %v2129 = vand.u32 %v1947, 4294901760
    %v2130 = vsub.f32 %v1947, %v2129
    %v2131 = vand.u32 %v2130, 4294901760
    %v2132 = vsub.f32 %v2130, %v2131
    %v2133 = vand.u32 %v2132, 4294901760
    %2134 = vmatpush1.msra.mxu0 %v2133
    %2135 = vmatprep.subr.mxu0 0.0
    %v2136 = vand.u32 %v1948, 4294901760
    %v2137 = vsub.f32 %v1948, %v2136
    %v2138 = vand.u32 %v2137, 4294901760
    %v2139 = vsub.f32 %v2137, %v2138
    %v2140 = vand.u32 %v2139, 4294901760
    %2141 = vmatpush1.msra.mxu0 %v2140
    %2142 = vmatprep.subr.mxu0 0.0
    %v2143 = vand.u32 %v1949, 4294901760
    %v2144 = vsub.f32 %v1949, %v2143
    %v2145 = vand.u32 %v2144, 4294901760
    %v2146 = vsub.f32 %v2144, %v2145
    %v2147 = vand.u32 %v2146, 4294901760
    %2148 = vmatpush1.msra.mxu0 %v2147
    %2149 = vmatprep.subr.mxu0 0.0
    %v2150 = vand.u32 %v1950, 4294901760
    %v2151 = vsub.f32 %v1950, %v2150
    %v2152 = vand.u32 %v2151, 4294901760
    %v2153 = vsub.f32 %v2151, %v2152
    %v2154 = vand.u32 %v2153, 4294901760
    %2155 = vmatpush1.msra.mxu0 %v2154
    %2156 = vmatprep.subr.mxu0 0.0
    %2157 = vmatpush1.msra.mxu0 0.0
    %2158 = vmatprep.subr.mxu0 0.0
    %2159 = vmatpush1.msra.mxu0 0.0
    %2160 = vmatprep.subr.mxu0 0.0
    %2161 = vmatpush1.msra.mxu0 0.0
    %2162 = vmatprep.subr.mxu0 0.0
    %2163 = vmatpush1.msra.mxu0 0.0
    %2164 = vmatprep.subr.mxu0 0.0
    %2165 = vmatpush1.msra.mxu0 0.0
    %2166 = vmatprep.subr.mxu0 0.0
    %2167 = vmatpush1.msra.mxu0 0.0
    %2168 = vmatprep.subr.mxu0 0.0
    %2169 = vmatpush1.msra.mxu0 0.0
    %2170 = vmatprep.subr.mxu0 0.0
    %2171 = vmatpush1.msra.mxu0 0.0
    %2172 = vmatprep.subr.mxu0 0.0
    %2173 = vmatpush1.msra.mxu0 0.0
    %2174 = vmatprep.subr.mxu0 0.0
    %2175 = vmatpush1.msra.mxu0 0.0
    %2176 = vmatprep.subr.mxu0 0.0
    %2177 = vmatpush1.msra.mxu0 0.0
    %2178 = vmatprep.subr.mxu0 0.0
    %2179 = vmatpush1.msra.mxu0 0.0
    %2180 = vmatprep.subr.mxu0 0.0
    %2181 = vmatpush1.msra.mxu0 0.0
    %2182 = vmatprep.subr.mxu0 0.0
    %2183 = vmatpush1.msra.mxu0 0.0
    %2184 = vmatprep.subr.mxu0 0.0
    %2185 = vmatpush1.msra.mxu0 0.0
    %2186 = vmatprep.subr.mxu0 0.0
    %2187 = vmatpush1.msra.mxu0 0.0
    %2188 = vmatprep.mubr.f32.mxu0 0.0
    %v2189 = vand.u32 %v1934, 4294901760
    %2190 = vmatmul.mubr.f32.gmra.mrb[0].mxu0 %v2189
    %v2191 = vpop.f32.mrb[0].mxu0
    %v2192 = vadd.f32 %v2041, %v2191
    %v2193 = vpop.f32.mrb[0].mxu0
    %2194 = vdwg.mxu0
    %2195 = vmatprep.subr.mxu0 0.0
    %v2196 = vand.u32 %v1935, 4294901760
    %v2197 = vsub.f32 %v1935, %v2196
    %2198 = vmatpush1.msra.mxu0 %v2197
    %2199 = vmatprep.subr.mxu0 0.0
    %v2200 = vand.u32 %v1936, 4294901760
    %v2201 = vsub.f32 %v1936, %v2200
    %2202 = vmatpush1.msra.mxu0 %v2201
    %2203 = vmatprep.subr.mxu0 0.0
    %v2204 = vand.u32 %v1937, 4294901760
    %v2205 = vsub.f32 %v1937, %v2204
    %2206 = vmatpush1.msra.mxu0 %v2205
    %2207 = vmatprep.subr.mxu0 0.0
    %v2208 = vand.u32 %v1938, 4294901760
    %v2209 = vsub.f32 %v1938, %v2208
    %2210 = vmatpush1.msra.mxu0 %v2209
    %2211 = vmatprep.subr.mxu0 0.0
    %v2212 = vand.u32 %v1939, 4294901760
    %v2213 = vsub.f32 %v1939, %v2212
    %2214 = vmatpush1.msra.mxu0 %v2213
    %2215 = vmatprep.subr.mxu0 0.0
    %v2216 = vand.u32 %v1940, 4294901760
    %v2217 = vsub.f32 %v1940, %v2216
    %2218 = vmatpush1.msra.mxu0 %v2217
    %2219 = vmatprep.subr.mxu0 0.0
    %v2220 = vand.u32 %v1941, 4294901760
    %v2221 = vsub.f32 %v1941, %v2220
    %2222 = vmatpush1.msra.mxu0 %v2221
    %2223 = vmatprep.subr.mxu0 0.0
    %v2224 = vand.u32 %v1942, 4294901760
    %v2225 = vsub.f32 %v1942, %v2224
    %2226 = vmatpush1.msra.mxu0 %v2225
    %2227 = vmatprep.subr.mxu0 0.0
    %v2228 = vand.u32 %v1943, 4294901760
    %v2229 = vsub.f32 %v1943, %v2228
    %2230 = vmatpush1.msra.mxu0 %v2229
    %2231 = vmatprep.subr.mxu0 0.0
    %v2232 = vand.u32 %v1944, 4294901760
    %v2233 = vsub.f32 %v1944, %v2232
    %2234 = vmatpush1.msra.mxu0 %v2233
    %2235 = vmatprep.subr.mxu0 0.0
    %v2236 = vand.u32 %v1945, 4294901760
    %v2237 = vsub.f32 %v1945, %v2236
    %2238 = vmatpush1.msra.mxu0 %v2237
    %2239 = vmatprep.subr.mxu0 0.0
    %v2240 = vand.u32 %v1946, 4294901760
    %v2241 = vsub.f32 %v1946, %v2240
    %2242 = vmatpush1.msra.mxu0 %v2241
    %2243 = vmatprep.subr.mxu0 0.0
    %v2244 = vand.u32 %v1947, 4294901760
    %v2245 = vsub.f32 %v1947, %v2244
    %2246 = vmatpush1.msra.mxu0 %v2245
    %2247 = vmatprep.subr.mxu0 0.0
    %v2248 = vand.u32 %v1948, 4294901760
    %v2249 = vsub.f32 %v1948, %v2248
    %2250 = vmatpush1.msra.mxu0 %v2249
    %2251 = vmatprep.subr.mxu0 0.0
    %v2252 = vand.u32 %v1949, 4294901760
    %v2253 = vsub.f32 %v1949, %v2252
    %2254 = vmatpush1.msra.mxu0 %v2253
    %2255 = vmatprep.subr.mxu0 0.0
    %v2256 = vand.u32 %v1950, 4294901760
    %v2257 = vsub.f32 %v1950, %v2256
    %2258 = vmatpush1.msra.mxu0 %v2257
    %2259 = vmatprep.subr.mxu0 0.0
    %2260 = vmatpush1.msra.mxu0 0.0
    %2261 = vmatprep.subr.mxu0 0.0
    %2262 = vmatpush1.msra.mxu0 0.0
    %2263 = vmatprep.subr.mxu0 0.0
    %2264 = vmatpush1.msra.mxu0 0.0
    %2265 = vmatprep.subr.mxu0 0.0
    %2266 = vmatpush1.msra.mxu0 0.0
    %2267 = vmatprep.subr.mxu0 0.0
    %2268 = vmatpush1.msra.mxu0 0.0
    %2269 = vmatprep.subr.mxu0 0.0
    %2270 = vmatpush1.msra.mxu0 0.0
    %2271 = vmatprep.subr.mxu0 0.0
    %2272 = vmatpush1.msra.mxu0 0.0
    %2273 = vmatprep.subr.mxu0 0.0
    %2274 = vmatpush1.msra.mxu0 0.0
    %2275 = vmatprep.subr.mxu0 0.0
    %2276 = vmatpush1.msra.mxu0 0.0
    %2277 = vmatprep.subr.mxu0 0.0
    %2278 = vmatpush1.msra.mxu0 0.0
    %2279 = vmatprep.subr.mxu0 0.0
    %2280 = vmatpush1.msra.mxu0 0.0
    %2281 = vmatprep.subr.mxu0 0.0
    %2282 = vmatpush1.msra.mxu0 0.0
    %2283 = vmatprep.subr.mxu0 0.0
    %2284 = vmatpush1.msra.mxu0 0.0
    %2285 = vmatprep.subr.mxu0 0.0
    %2286 = vmatpush1.msra.mxu0 0.0
    %2287 = vmatprep.subr.mxu0 0.0
    %2288 = vmatpush1.msra.mxu0 0.0
    %2289 = vmatprep.subr.mxu0 0.0
    %2290 = vmatpush1.msra.mxu0 0.0
    %2291 = vmatprep.mubr.f32.mxu0 0.0
    %v2292 = vand.u32 %v1934, 4294901760
    %v2293 = vsub.f32 %v1934, %v2292
    %2294 = vmatmul.mubr.f32.gmra.mrb[0].mxu0 %v2293
    %v2295 = vpop.f32.mrb[0].mxu0
    %v2296 = vadd.f32 %v2192, %v2295
    %v2297 = vpop.f32.mrb[0].mxu0
    %2298 = vdwg.mxu0
    %2299 = vmatprep.subr.mxu0 0.0
    %v2300 = vand.u32 %v1935, 4294901760
    %2301 = vmatpush1.msra.mxu0 %v2300
    %2302 = vmatprep.subr.mxu0 0.0
    %v2303 = vand.u32 %v1936, 4294901760
    %2304 = vmatpush1.msra.mxu0 %v2303
    %2305 = vmatprep.subr.mxu0 0.0
    %v2306 = vand.u32 %v1937, 4294901760
    %2307 = vmatpush1.msra.mxu0 %v2306
    %2308 = vmatprep.subr.mxu0 0.0
    %v2309 = vand.u32 %v1938, 4294901760
    %2310 = vmatpush1.msra.mxu0 %v2309
    %2311 = vmatprep.subr.mxu0 0.0
    %v2312 = vand.u32 %v1939, 4294901760
    %2313 = vmatpush1.msra.mxu0 %v2312
    %2314 = vmatprep.subr.mxu0 0.0
    %v2315 = vand.u32 %v1940, 4294901760
    %2316 = vmatpush1.msra.mxu0 %v2315
    %2317 = vmatprep.subr.mxu0 0.0
    %v2318 = vand.u32 %v1941, 4294901760
    %2319 = vmatpush1.msra.mxu0 %v2318
    %2320 = vmatprep.subr.mxu0 0.0
    %v2321 = vand.u32 %v1942, 4294901760
    %2322 = vmatpush1.msra.mxu0 %v2321
    %2323 = vmatprep.subr.mxu0 0.0
    %v2324 = vand.u32 %v1943, 4294901760
    %2325 = vmatpush1.msra.mxu0 %v2324
    %2326 = vmatprep.subr.mxu0 0.0
    %v2327 = vand.u32 %v1944, 4294901760
    %2328 = vmatpush1.msra.mxu0 %v2327
    %2329 = vmatprep.subr.mxu0 0.0
    %v2330 = vand.u32 %v1945, 4294901760
    %2331 = vmatpush1.msra.mxu0 %v2330
    %2332 = vmatprep.subr.mxu0 0.0
    %v2333 = vand.u32 %v1946, 4294901760
    %2334 = vmatpush1.msra.mxu0 %v2333
    %2335 = vmatprep.subr.mxu0 0.0
    %v2336 = vand.u32 %v1947, 4294901760
    %2337 = vmatpush1.msra.mxu0 %v2336
    %2338 = vmatprep.subr.mxu0 0.0
    %v2339 = vand.u32 %v1948, 4294901760
    %2340 = vmatpush1.msra.mxu0 %v2339
    %2341 = vmatprep.subr.mxu0 0.0
    %v2342 = vand.u32 %v1949, 4294901760
    %2343 = vmatpush1.msra.mxu0 %v2342
    %2344 = vmatprep.subr.mxu0 0.0
    %v2345 = vand.u32 %v1950, 4294901760
    %2346 = vmatpush1.msra.mxu0 %v2345
    %2347 = vmatprep.subr.mxu0 0.0
    %2348 = vmatpush1.msra.mxu0 0.0
    %2349 = vmatprep.subr.mxu0 0.0
    %2350 = vmatpush1.msra.mxu0 0.0
    %2351 = vmatprep.subr.mxu0 0.0
    %2352 = vmatpush1.msra.mxu0 0.0
    %2353 = vmatprep.subr.mxu0 0.0
    %2354 = vmatpush1.msra.mxu0 0.0
    %2355 = vmatprep.subr.mxu0 0.0
    %2356 = vmatpush1.msra.mxu0 0.0
    %2357 = vmatprep.subr.mxu0 0.0
    %2358 = vmatpush1.msra.mxu0 0.0
    %2359 = vmatprep.subr.mxu0 0.0
    %2360 = vmatpush1.msra.mxu0 0.0
    %2361 = vmatprep.subr.mxu0 0.0
    %2362 = vmatpush1.msra.mxu0 0.0
    %2363 = vmatprep.subr.mxu0 0.0
    %2364 = vmatpush1.msra.mxu0 0.0
    %2365 = vmatprep.subr.mxu0 0.0
    %2366 = vmatpush1.msra.mxu0 0.0
    %2367 = vmatprep.subr.mxu0 0.0
    %2368 = vmatpush1.msra.mxu0 0.0
    %2369 = vmatprep.subr.mxu0 0.0
    %2370 = vmatpush1.msra.mxu0 0.0
    %2371 = vmatprep.subr.mxu0 0.0
    %2372 = vmatpush1.msra.mxu0 0.0
    %2373 = vmatprep.subr.mxu0 0.0
    %2374 = vmatpush1.msra.mxu0 0.0
    %2375 = vmatprep.subr.mxu0 0.0
    %2376 = vmatpush1.msra.mxu0 0.0
    %2377 = vmatprep.subr.mxu0 0.0
    %2378 = vmatpush1.msra.mxu0 0.0
    %2379 = vmatprep.mubr.f32.mxu0 0.0
    %v2380 = vand.u32 %v1934, 4294901760
    %v2381 = vsub.f32 %v1934, %v2380
    %v2382 = vand.u32 %v2381, 4294901760
    %2383 = vmatmul.mubr.f32.gmra.mrb[0].mxu0 %v2382
    %v2384 = vpop.f32.mrb[0].mxu0
    %v2385 = vadd.f32 %v2296, %v2384
    %v2386 = vpop.f32.mrb[0].mxu0
    %2387 = vdwg.mxu0
    %2388 = vmatprep.subr.mxu0 0.0
    %v2389 = vand.u32 %v1935, 4294901760
    %v2390 = vsub.f32 %v1935, %v2389
    %v2391 = vand.u32 %v2390, 4294901760
    %2392 = vmatpush1.msra.mxu0 %v2391
    %2393 = vmatprep.subr.mxu0 0.0
    %v2394 = vand.u32 %v1936, 4294901760
    %v2395 = vsub.f32 %v1936, %v2394
    %v2396 = vand.u32 %v2395, 4294901760
    %2397 = vmatpush1.msra.mxu0 %v2396
    %2398 = vmatprep.subr.mxu0 0.0
    %v2399 = vand.u32 %v1937, 4294901760
    %v2400 = vsub.f32 %v1937, %v2399
    %v2401 = vand.u32 %v2400, 4294901760
    %2402 = vmatpush1.msra.mxu0 %v2401
    %2403 = vmatprep.subr.mxu0 0.0
    %v2404 = vand.u32 %v1938, 4294901760
    %v2405 = vsub.f32 %v1938, %v2404
    %v2406 = vand.u32 %v2405, 4294901760
    %2407 = vmatpush1.msra.mxu0 %v2406
    %2408 = vmatprep.subr.mxu0 0.0
    %v2409 = vand.u32 %v1939, 4294901760
    %v2410 = vsub.f32 %v1939, %v2409
    %v2411 = vand.u32 %v2410, 4294901760
    %2412 = vmatpush1.msra.mxu0 %v2411
    %2413 = vmatprep.subr.mxu0 0.0
    %v2414 = vand.u32 %v1940, 4294901760
    %v2415 = vsub.f32 %v1940, %v2414
    %v2416 = vand.u32 %v2415, 4294901760
    %2417 = vmatpush1.msra.mxu0 %v2416
    %2418 = vmatprep.subr.mxu0 0.0
    %v2419 = vand.u32 %v1941, 4294901760
    %v2420 = vsub.f32 %v1941, %v2419
    %v2421 = vand.u32 %v2420, 4294901760
    %2422 = vmatpush1.msra.mxu0 %v2421
    %2423 = vmatprep.subr.mxu0 0.0
    %v2424 = vand.u32 %v1942, 4294901760
    %v2425 = vsub.f32 %v1942, %v2424
    %v2426 = vand.u32 %v2425, 4294901760
    %2427 = vmatpush1.msra.mxu0 %v2426
    %2428 = vmatprep.subr.mxu0 0.0
    %v2429 = vand.u32 %v1943, 4294901760
    %v2430 = vsub.f32 %v1943, %v2429
    %v2431 = vand.u32 %v2430, 4294901760
    %2432 = vmatpush1.msra.mxu0 %v2431
    %2433 = vmatprep.subr.mxu0 0.0
    %v2434 = vand.u32 %v1944, 4294901760
    %v2435 = vsub.f32 %v1944, %v2434
    %v2436 = vand.u32 %v2435, 4294901760
    %2437 = vmatpush1.msra.mxu0 %v2436
    %2438 = vmatprep.subr.mxu0 0.0
    %v2439 = vand.u32 %v1945, 4294901760
    %v2440 = vsub.f32 %v1945, %v2439
    %v2441 = vand.u32 %v2440, 4294901760
    %2442 = vmatpush1.msra.mxu0 %v2441
    %2443 = vmatprep.subr.mxu0 0.0
    %v2444 = vand.u32 %v1946, 4294901760
    %v2445 = vsub.f32 %v1946, %v2444
    %v2446 = vand.u32 %v2445, 4294901760
    %2447 = vmatpush1.msra.mxu0 %v2446
    %2448 = vmatprep.subr.mxu0 0.0
    %v2449 = vand.u32 %v1947, 4294901760
    %v2450 = vsub.f32 %v1947, %v2449
    %v2451 = vand.u32 %v2450, 4294901760
    %2452 = vmatpush1.msra.mxu0 %v2451
    %2453 = vmatprep.subr.mxu0 0.0
    %v2454 = vand.u32 %v1948, 4294901760
    %v2455 = vsub.f32 %v1948, %v2454
    %v2456 = vand.u32 %v2455, 4294901760
    %2457 = vmatpush1.msra.mxu0 %v2456
    %2458 = vmatprep.subr.mxu0 0.0
    %v2459 = vand.u32 %v1949, 4294901760
    %v2460 = vsub.f32 %v1949, %v2459
    %v2461 = vand.u32 %v2460, 4294901760
    %2462 = vmatpush1.msra.mxu0 %v2461
    %2463 = vmatprep.subr.mxu0 0.0
    %v2464 = vand.u32 %v1950, 4294901760
    %v2465 = vsub.f32 %v1950, %v2464
    %v2466 = vand.u32 %v2465, 4294901760
    %2467 = vmatpush1.msra.mxu0 %v2466
    %2468 = vmatprep.subr.mxu0 0.0
    %2469 = vmatpush1.msra.mxu0 0.0
    %2470 = vmatprep.subr.mxu0 0.0
    %2471 = vmatpush1.msra.mxu0 0.0
    %2472 = vmatprep.subr.mxu0 0.0
    %2473 = vmatpush1.msra.mxu0 0.0
    %2474 = vmatprep.subr.mxu0 0.0
    %2475 = vmatpush1.msra.mxu0 0.0
    %2476 = vmatprep.subr.mxu0 0.0
    %2477 = vmatpush1.msra.mxu0 0.0
    %2478 = vmatprep.subr.mxu0 0.0
    %2479 = vmatpush1.msra.mxu0 0.0
    %2480 = vmatprep.subr.mxu0 0.0
    %2481 = vmatpush1.msra.mxu0 0.0
    %2482 = vmatprep.subr.mxu0 0.0
    %2483 = vmatpush1.msra.mxu0 0.0
    %2484 = vmatprep.subr.mxu0 0.0
    %2485 = vmatpush1.msra.mxu0 0.0
    %2486 = vmatprep.subr.mxu0 0.0
    %2487 = vmatpush1.msra.mxu0 0.0
    %2488 = vmatprep.subr.mxu0 0.0
    %2489 = vmatpush1.msra.mxu0 0.0
    %2490 = vmatprep.subr.mxu0 0.0
    %2491 = vmatpush1.msra.mxu0 0.0
    %2492 = vmatprep.subr.mxu0 0.0
    %2493 = vmatpush1.msra.mxu0 0.0
    %2494 = vmatprep.subr.mxu0 0.0
    %2495 = vmatpush1.msra.mxu0 0.0
    %2496 = vmatprep.subr.mxu0 0.0
    %2497 = vmatpush1.msra.mxu0 0.0
    %2498 = vmatprep.subr.mxu0 0.0
    %2499 = vmatpush1.msra.mxu0 0.0
    %2500 = vmatprep.mubr.f32.mxu0 0.0
    %v2501 = vand.u32 %v1934, 4294901760
    %2502 = vmatmul.mubr.f32.gmra.mrb[0].mxu0 %v2501
    %v2503 = vpop.f32.mrb[0].mxu0
    %v2504 = vadd.f32 %v2385, %v2503
    %v2505 = vpop.f32.mrb[0].mxu0
    %2506 = vdwg.mxu0
    %2507 = vmatprep.subr.mxu0 0.0
    %v2508 = vand.u32 %v1935, 4294901760
    %2509 = vmatpush1.msra.mxu0 %v2508
    %2510 = vmatprep.subr.mxu0 0.0
    %v2511 = vand.u32 %v1936, 4294901760
    %2512 = vmatpush1.msra.mxu0 %v2511
    %2513 = vmatprep.subr.mxu0 0.0
    %v2514 = vand.u32 %v1937, 4294901760
    %2515 = vmatpush1.msra.mxu0 %v2514
    %2516 = vmatprep.subr.mxu0 0.0
    %v2517 = vand.u32 %v1938, 4294901760
    %2518 = vmatpush1.msra.mxu0 %v2517
    %2519 = vmatprep.subr.mxu0 0.0
    %v2520 = vand.u32 %v1939, 4294901760
    %2521 = vmatpush1.msra.mxu0 %v2520
    %2522 = vmatprep.subr.mxu0 0.0
    %v2523 = vand.u32 %v1940, 4294901760
    %2524 = vmatpush1.msra.mxu0 %v2523
    %2525 = vmatprep.subr.mxu0 0.0
    %v2526 = vand.u32 %v1941, 4294901760
    %2527 = vmatpush1.msra.mxu0 %v2526
    %2528 = vmatprep.subr.mxu0 0.0
    %v2529 = vand.u32 %v1942, 4294901760
    %2530 = vmatpush1.msra.mxu0 %v2529
    %2531 = vmatprep.subr.mxu0 0.0
    %v2532 = vand.u32 %v1943, 4294901760
    %2533 = vmatpush1.msra.mxu0 %v2532
    %2534 = vmatprep.subr.mxu0 0.0
    %v2535 = vand.u32 %v1944, 4294901760
    %2536 = vmatpush1.msra.mxu0 %v2535
    %2537 = vmatprep.subr.mxu0 0.0
    %v2538 = vand.u32 %v1945, 4294901760
    %2539 = vmatpush1.msra.mxu0 %v2538
    %2540 = vmatprep.subr.mxu0 0.0
    %v2541 = vand.u32 %v1946, 4294901760
    %2542 = vmatpush1.msra.mxu0 %v2541
    %2543 = vmatprep.subr.mxu0 0.0
    %v2544 = vand.u32 %v1947, 4294901760
    %2545 = vmatpush1.msra.mxu0 %v2544
    %2546 = vmatprep.subr.mxu0 0.0
    %v2547 = vand.u32 %v1948, 4294901760
    %2548 = vmatpush1.msra.mxu0 %v2547
    %2549 = vmatprep.subr.mxu0 0.0
    %v2550 = vand.u32 %v1949, 4294901760
    %2551 = vmatpush1.msra.mxu0 %v2550
    %2552 = vmatprep.subr.mxu0 0.0
    %v2553 = vand.u32 %v1950, 4294901760
    %2554 = vmatpush1.msra.mxu0 %v2553
    %2555 = vmatprep.subr.mxu0 0.0
    %2556 = vmatpush1.msra.mxu0 0.0
    %2557 = vmatprep.subr.mxu0 0.0
    %2558 = vmatpush1.msra.mxu0 0.0
    %2559 = vmatprep.subr.mxu0 0.0
    %2560 = vmatpush1.msra.mxu0 0.0
    %2561 = vmatprep.subr.mxu0 0.0
    %2562 = vmatpush1.msra.mxu0 0.0
    %2563 = vmatprep.subr.mxu0 0.0
    %2564 = vmatpush1.msra.mxu0 0.0
    %2565 = vmatprep.subr.mxu0 0.0
    %2566 = vmatpush1.msra.mxu0 0.0
    %2567 = vmatprep.subr.mxu0 0.0
    %2568 = vmatpush1.msra.mxu0 0.0
    %2569 = vmatprep.subr.mxu0 0.0
    %2570 = vmatpush1.msra.mxu0 0.0
    %2571 = vmatprep.subr.mxu0 0.0
    %2572 = vmatpush1.msra.mxu0 0.0
    %2573 = vmatprep.subr.mxu0 0.0
    %2574 = vmatpush1.msra.mxu0 0.0
    %2575 = vmatprep.subr.mxu0 0.0
    %2576 = vmatpush1.msra.mxu0 0.0
    %2577 = vmatprep.subr.mxu0 0.0
    %2578 = vmatpush1.msra.mxu0 0.0
    %2579 = vmatprep.subr.mxu0 0.0
    %2580 = vmatpush1.msra.mxu0 0.0
    %2581 = vmatprep.subr.mxu0 0.0
    %2582 = vmatpush1.msra.mxu0 0.0
    %2583 = vmatprep.subr.mxu0 0.0
    %2584 = vmatpush1.msra.mxu0 0.0
    %2585 = vmatprep.subr.mxu0 0.0
    %2586 = vmatpush1.msra.mxu0 0.0
    %2587 = vmatprep.mubr.f32.mxu0 0.0
    %v2588 = vand.u32 %v1934, 4294901760
    %2589 = vmatmul.mubr.f32.gmra.mrb[0].mxu0 %v2588
    %v2590 = vpop.f32.mrb[0].mxu0
    %v2591 = vadd.f32 %v2504, %v2590
    %v2592 = vpop.f32.mrb[0].mxu0
    %2593 = vdwg.mxu0
    %vm2594 = vcmask 7168
    %2595 = vst.msk [vmem:[%s7] sm:$0xff] %vm2594, %v2591
    // Predicated region
    $region34: #{tpu_custom_call.1} parent=1 // pred_check
      _
    $region35: #{tpu_custom_call.1} parent=1 // pred_check_branch
      %2597 = sbr.rel (0) target = $region37
    $region36: #{tpu_custom_call.1} parent=1 // pred_region
      _
    $region37: #{tpu_custom_call.1} parent=1 // pred_fallthru
      _
    // Predicated region
    $region38: #{tpu_custom_call.1} parent=1 // pred_check
      _
    $region39: #{tpu_custom_call.1} parent=1 // pred_check_branch
      %2599 = sbr.rel (0) target = $region41
    $region40: #{tpu_custom_call.1} parent=1 // pred_region
      _
    $region41: #{tpu_custom_call.1} parent=1 // pred_fallthru
      _
    %2600 = vsyncpa [#allocation4], 1

</llo_original>
